<compile_context>
chip_gen: v5e
topology: v5e:2x2
jax: 0.10.0
libtpu: 0.0.40
codegen_flags: <defaults>
</compile_context>

<pallas_src>
import jax
import jax.numpy as jnp
from jax import lax
from jax.experimental import pallas as pl
from jax.experimental.pallas import tpu as pltpu

HIDDEN = 64
FC1 = 32
BN_EPS = 1e-5


def lstm_classifier_kernel(x_ref,                     # (T*Bp, F)   time-major, flattened
                           wih0_ref, b0_ref,          # (F, 4H), (1, 4H)   gate order i,f,o,g
                           whh0_ref,                  # (H, 4H)
                           w1_ref, b1_ref,            # (2H, 4H) = [Wih1; Whh1], (1, 4H)
                           wfc1_ref, bfc1_ref,        # (H, 32), (1, 32)   BN folded in
                           wfc2_ref, bfc2_ref,        # (32, 1), (1, 1)
                           out_ref,                   # (Bp, 1)
                           proj_ref):                 # VMEM scratch (T*Bp, 4H)
    TB = x_ref.shape[0]
    H = whh0_ref.shape[0]
    H4 = 4 * H
    Bp = out_ref.shape[0]
    T = TB // Bp

    # ---- layer-0 input projection for all timesteps at once (off the serial chain),
    #      bias folded in; parked in VMEM scratch to keep vreg pressure low.
    proj_ref[...] = (
        jnp.dot(x_ref[...], wih0_ref[...], preferred_element_type=jnp.float32)
        + b0_ref[...])

    # hoist the layer-1 bias broadcast out of the unrolled recurrence
    b1b = jnp.broadcast_to(b1_ref[...], (Bp, H4))

    def cell_math(gates, c):
        # gate columns are (i, f, o, g): one sigmoid slab + one tanh slab.
        sig = jax.nn.sigmoid(gates[:, :3 * H])
        g = jnp.tanh(gates[:, 3 * H:])
        i = sig[:, :H]
        f = sig[:, H:2 * H]
        o = sig[:, 2 * H:]
        c_new = f * c + i * g
        h_new = o * jnp.tanh(c_new)
        return h_new, c_new

    def step(t, carry):
        h0, c0, h1, c1 = carry
        off = pl.multiple_of(t * Bp, Bp)
        # layer 0: only the recurrent matmul is on the chain; input proj is precomputed.
        g0 = (jnp.dot(h0, whh0_ref[...], preferred_element_type=jnp.float32)
              + proj_ref[pl.ds(off, Bp), :])
        h0, c0 = cell_math(g0, c0)
        # layer 1: fused [h0 ‖ h1] @ [Wih1; Whh1]  (K = 2H = 128)
        x1 = jnp.concatenate([h0, h1], axis=1)
        g1 = jnp.dot(x1, w1_ref[...], preferred_element_type=jnp.float32) + b1b
        h1, c1 = cell_math(g1, c1)
        return h0, c0, h1, c1

    zeros = jnp.zeros((Bp, H), jnp.float32)
    h0, c0, h1, c1 = lax.fori_loop(0, T, step, (zeros, zeros, zeros, zeros),
                                   unroll=True)

    # ---- head on the last timestep of the top layer (== lstm_out[:, -1, :])
    # fc1 with eval-mode BatchNorm folded in -> ReLU -> (dropout = identity) -> fc2 -> clamp
    z = jnp.dot(h1, wfc1_ref[...], preferred_element_type=jnp.float32) + bfc1_ref[...]
    z = jnp.maximum(z, 0.0)
    z = jnp.dot(z, wfc2_ref[...], preferred_element_type=jnp.float32) + bfc2_ref[...]
    out_ref[...] = jnp.clip(z, 1.0, 3.0)


def lstm_classifier_forward(x, params):
    """x: (B, T, F) float32, batch-first like the PyTorch module."""
    B, T, F = x.shape
    H = HIDDEN
    Bp = ((B + 7) // 8) * 8                      # pad batch to full sublanes

    def reorder(w):
        # columns ordered (i, f, g, o) -> (i, f, o, g)
        return jnp.concatenate([w[:, :2 * H], w[:, 3 * H:], w[:, 2 * H:3 * H]], axis=1)

    # time-major, batch padded, flattened to (T*Bp, F)
    xt = jnp.transpose(x, (1, 0, 2)).astype(jnp.float32)
    xt = jnp.pad(xt, ((0, 0), (0, Bp - B), (0, 0)))
    x_flat = xt.reshape(T * Bp, F)

    wih0 = reorder(params["wih0"].T)                                   # (F, 4H)
    b0 = reorder(params["b0"][None, :])                                # (1, 4H)
    whh0 = reorder(params["whh0"].T)                                   # (H, 4H)
    w1 = jnp.concatenate([reorder(params["wih1"].T),
                          reorder(params["whh1"].T)], axis=0)          # (2H, 4H)
    b1 = reorder(params["b1"][None, :])                                # (1, 4H)

    # fold eval-mode BatchNorm1d into fc1
    scale = params["gamma"] / jnp.sqrt(params["rvar"] + BN_EPS)        # (32,)
    w_fc1 = params["w_fc1"].T * scale[None, :]                         # (H, 32)
    b_fc1 = (params["b_fc1"] - params["rmean"]) * scale + params["beta"]

    ins = (
        x_flat,
        wih0, b0, whh0,
        w1, b1,
        w_fc1, b_fc1[None, :],
        params["w_fc2"].T, params["b_fc2"][None, :],
    )
    vmem = pl.BlockSpec(memory_space=pltpu.MemorySpace.VMEM)
    out = pl.pallas_call(
        lstm_classifier_kernel,
        out_shape=jax.ShapeDtypeStruct((Bp, 1), jnp.float32),
        in_specs=[vmem] * len(ins),
        out_specs=vmem,
        scratch_shapes=[pltpu.VMEM((T * Bp, 4 * H), jnp.float32)],
    )(*ins)
    return out[:B]


def init_params(key, input_size=31, hidden=HIDDEN):
    ks = jax.random.split(key, 12)
    s = 1.0 / jnp.sqrt(float(hidden))

    def u(k, shape):
        return jax.random.uniform(k, shape, jnp.float32, -s, s)

    return dict(
        # LSTM layer 0 (PyTorch gate order i, f, g, o)
        wih0=u(ks[0], (4 * hidden, input_size)),
        whh0=u(ks[1], (4 * hidden, hidden)),
        b0=u(ks[2], (4 * hidden,)) + u(ks[3], (4 * hidden,)),   # b_ih + b_hh folded
        # LSTM layer 1
        wih1=u(ks[4], (4 * hidden, hidden)),
        whh1=u(ks[5], (4 * hidden, hidden)),
        b1=u(ks[6], (4 * hidden,)) + u(ks[7], (4 * hidden,)),
        # fc1 / bn1 / fc2
        w_fc1=u(ks[8], (FC1, hidden)),
        b_fc1=u(ks[9], (FC1,)),
        gamma=jnp.ones((FC1,), jnp.float32),
        beta=jnp.zeros((FC1,), jnp.float32),
        rmean=jnp.zeros((FC1,), jnp.float32),
        rvar=jnp.ones((FC1,), jnp.float32),
        w_fc2=u(ks[10], (1, FC1)),
        b_fc2=u(ks[11], (1,)),
    )


def reference_forward(x, params):
    """Pure-JAX reference mirroring the PyTorch eval-mode forward."""
    B, T, F = x.shape
    H = HIDDEN

    def cell(x_t, h, c, wih, whh, b):
        gates = x_t @ wih.T + h @ whh.T + b
        i = jax.nn.sigmoid(gates[:, :H])
        f = jax.nn.sigmoid(gates[:, H:2 * H])
        g = jnp.tanh(gates[:, 2 * H:3 * H])
        o = jax.nn.sigmoid(gates[:, 3 * H:])
        c = f * c + i * g
        return o * jnp.tanh(c), c

    h0 = c0 = h1 = c1 = jnp.zeros((B, H), jnp.float32)
    for t in range(T):
        h0, c0 = cell(x[:, t], h0, c0, params["wih0"], params["whh0"], params["b0"])
        h1, c1 = cell(h0, h1, c1, params["wih1"], params["whh1"], params["b1"])
    z = h1 @ params["w_fc1"].T + params["b_fc1"]
    z = (z - params["rmean"]) / jnp.sqrt(params["rvar"] + BN_EPS) * params["gamma"] \
        + params["beta"]
    z = jnp.maximum(z, 0.0)
    z = z @ params["w_fc2"].T + params["b_fc2"]
    return jnp.clip(z, 1.0, 3.0)


if __name__ == "__main__":
    key = jax.random.PRNGKey(0)
    kx, kp = jax.random.split(key)
    B, T, F = 2, 8, 31                      # batch=2, seq=8, input_size=31
    x = jax.random.normal(kx, (B, T, F), jnp.float32)
    params = init_params(kp, input_size=F, hidden=HIDDEN)

    out = lstm_classifier_forward(x, params)
    out = jax.block_until_ready(out)

    ref = reference_forward(x, params)
    assert out.shape == (B, 1)
    assert jnp.allclose(out, ref, atol=1e-4, rtol=1e-4), (out, ref)
    print("KERNEL_OK")
</pallas_src>

<mosaic_0001>
module attributes {stable_mosaic.version = 11 : i64} {
  func.func @lstm_classifier_kernel(%arg0: memref<64x31xf32, #tpu.memory_space<vmem>>, %arg1: memref<31x256xf32, #tpu.memory_space<vmem>>, %arg2: memref<1x256xf32, #tpu.memory_space<vmem>>, %arg3: memref<64x256xf32, #tpu.memory_space<vmem>>, %arg4: memref<128x256xf32, #tpu.memory_space<vmem>>, %arg5: memref<1x256xf32, #tpu.memory_space<vmem>>, %arg6: memref<64x32xf32, #tpu.memory_space<vmem>>, %arg7: memref<1x32xf32, #tpu.memory_space<vmem>>, %arg8: memref<32x1xf32, #tpu.memory_space<vmem>>, %arg9: memref<1x1xf32, #tpu.memory_space<vmem>>, %arg10: memref<8x1xf32, #tpu.memory_space<vmem>>, %arg11: memref<64x256xf32, #tpu.memory_space<vmem>>) attributes {dimension_semantics = [], scalar_prefetch = 0 : i64, scratch_operands = 1 : i64, tpu.core_type = #tpu.core_type<tc>} {
    %c0 = arith.constant 0 : index
    %c0_0 = arith.constant 0 : index
    %0 = vector.load %arg0[%c0, %c0_0] : memref<64x31xf32, #tpu.memory_space<vmem>>, vector<64x31xf32>
    %c0_1 = arith.constant 0 : index
    %c0_2 = arith.constant 0 : index
    %1 = vector.load %arg1[%c0_1, %c0_2] : memref<31x256xf32, #tpu.memory_space<vmem>>, vector<31x256xf32>
    %cst = arith.constant dense<0.000000e+00> : vector<64x256xf32>
    %2 = tpu.matmul %0, %1, %cst {dimension_numbers = #tpu.dot_dimension_numbers<[1], [0], [0], [1], [0, 0, 1, 1], [], []>} : vector<64x31xf32>, vector<31x256xf32>, vector<64x256xf32> -> vector<64x256xf32>
    %c0_3 = arith.constant 0 : index
    %c0_4 = arith.constant 0 : index
    %3 = vector.load %arg2[%c0_3, %c0_4] : memref<1x256xf32, #tpu.memory_space<vmem>>, vector<1x256xf32>
    %4 = vector.broadcast %3 : vector<1x256xf32> to vector<64x256xf32>
    %5 = arith.addf %2, %4 : vector<64x256xf32>
    %c0_5 = arith.constant 0 : index
    %c0_6 = arith.constant 0 : index
    %6 = vector.load %arg11[%c0_5, %c0_6] : memref<64x256xf32, #tpu.memory_space<vmem>>, vector<64x256xf32>
    tpu.vector_store %arg11[%c0_5, %c0_6], %5 {strides = array<i32>} : memref<64x256xf32, #tpu.memory_space<vmem>>, vector<64x256xf32>,
    %c0_7 = arith.constant 0 : index
    %c0_8 = arith.constant 0 : index
    %7 = vector.load %arg5[%c0_7, %c0_8] : memref<1x256xf32, #tpu.memory_space<vmem>>, vector<1x256xf32>
    %8 = vector.shape_cast %7 : vector<1x256xf32> to vector<1x256xf32>
    %9 = vector.broadcast %8 : vector<1x256xf32> to vector<8x256xf32>
    %cst_9 = arith.constant 0.000000e+00 : f32
    %10 = vector.broadcast %cst_9 : f32 to vector<8x64xf32>
    %c0_i32 = arith.constant 0 : i32
    %c8_i32 = arith.constant 8 : i32
    %11 = arith.muli %c0_i32, %c8_i32 : i32
    %12 = tpu.assume_multiple %11, 8 : i32
    %c0_10 = arith.constant 0 : index
    %c0_11 = arith.constant 0 : index
    %13 = vector.load %arg3[%c0_10, %c0_11] : memref<64x256xf32, #tpu.memory_space<vmem>>, vector<64x256xf32>
    %cst_12 = arith.constant dense<0.000000e+00> : vector<8x256xf32>
    %14 = tpu.matmul %10, %13, %cst_12 {dimension_numbers = #tpu.dot_dimension_numbers<[1], [0], [0], [1], [0, 0, 1, 1], [], []>} : vector<8x64xf32>, vector<64x256xf32>, vector<8x256xf32> -> vector<8x256xf32>
    %15 = arith.index_cast %12 : i32 to index
    %c0_13 = arith.constant 0 : index
    %16 = vector.load %arg11[%15, %c0_13] : memref<64x256xf32, #tpu.memory_space<vmem>>, vector<8x256xf32>
    %17 = arith.addf %14, %16 : vector<8x256xf32>
    %18 = vector.extract_strided_slice %17 {offsets = [0, 0], sizes = [8, 192], strides = [1, 1]} : vector<8x256xf32> to vector<8x192xf32>
    %19 = arith.negf %18 : vector<8x192xf32>
    %20 = math.exp %19 : vector<8x192xf32>
    %cst_14 = arith.constant 1.000000e+00 : f32
    %21 = vector.broadcast %cst_14 : f32 to vector<8x192xf32>
    %22 = arith.addf %21, %20 : vector<8x192xf32>
    %23 = arith.divf %21, %22 : vector<8x192xf32>
    %24 = vector.extract_strided_slice %17 {offsets = [0, 192], sizes = [8, 64], strides = [1, 1]} : vector<8x256xf32> to vector<8x64xf32>
    %25 = math.tanh %24 : vector<8x64xf32>
    %26 = vector.extract_strided_slice %23 {offsets = [0, 0], sizes = [8, 64], strides = [1, 1]} : vector<8x192xf32> to vector<8x64xf32>
    %27 = vector.extract_strided_slice %23 {offsets = [0, 64], sizes = [8, 64], strides = [1, 1]} : vector<8x192xf32> to vector<8x64xf32>
    %28 = vector.extract_strided_slice %23 {offsets = [0, 128], sizes = [8, 64], strides = [1, 1]} : vector<8x192xf32> to vector<8x64xf32>
    %29 = arith.mulf %27, %10 : vector<8x64xf32>
    %30 = arith.mulf %26, %25 : vector<8x64xf32>
    %31 = arith.addf %29, %30 : vector<8x64xf32>
    %32 = math.tanh %31 : vector<8x64xf32>
    %33 = arith.mulf %28, %32 : vector<8x64xf32>
    %34 = tpu.concatenate %33, %10 in 1 : vector<8x64xf32>, vector<8x64xf32> -> vector<8x128xf32>
    %c0_15 = arith.constant 0 : index
    %c0_16 = arith.constant 0 : index
    %35 = vector.load %arg4[%c0_15, %c0_16] : memref<128x256xf32, #tpu.memory_space<vmem>>, vector<128x256xf32>
    %cst_17 = arith.constant dense<0.000000e+00> : vector<8x256xf32>
    %36 = tpu.matmul %34, %35, %cst_17 {dimension_numbers = #tpu.dot_dimension_numbers<[1], [0], [0], [1], [0, 0, 1, 1], [], []>} : vector<8x128xf32>, vector<128x256xf32>, vector<8x256xf32> -> vector<8x256xf32>
    %37 = arith.addf %36, %9 : vector<8x256xf32>
    %38 = vector.extract_strided_slice %37 {offsets = [0, 0], sizes = [8, 192], strides = [1, 1]} : vector<8x256xf32> to vector<8x192xf32>
    %39 = arith.negf %38 : vector<8x192xf32>
    %40 = math.exp %39 : vector<8x192xf32>
    %cst_18 = arith.constant 1.000000e+00 : f32
    %41 = vector.broadcast %cst_18 : f32 to vector<8x192xf32>
    %42 = arith.addf %41, %40 : vector<8x192xf32>
    %43 = arith.divf %41, %42 : vector<8x192xf32>
    %44 = vector.extract_strided_slice %37 {offsets = [0, 192], sizes = [8, 64], strides = [1, 1]} : vector<8x256xf32> to vector<8x64xf32>
    %45 = math.tanh %44 : vector<8x64xf32>
    %46 = vector.extract_strided_slice %43 {offsets = [0, 0], sizes = [8, 64], strides = [1, 1]} : vector<8x192xf32> to vector<8x64xf32>
    %47 = vector.extract_strided_slice %43 {offsets = [0, 64], sizes = [8, 64], strides = [1, 1]} : vector<8x192xf32> to vector<8x64xf32>
    %48 = vector.extract_strided_slice %43 {offsets = [0, 128], sizes = [8, 64], strides = [1, 1]} : vector<8x192xf32> to vector<8x64xf32>
    %49 = arith.mulf %47, %10 : vector<8x64xf32>
    %50 = arith.mulf %46, %45 : vector<8x64xf32>
    %51 = arith.addf %49, %50 : vector<8x64xf32>
    %52 = math.tanh %51 : vector<8x64xf32>
    %53 = arith.mulf %48, %52 : vector<8x64xf32>
    %c1_i32 = arith.constant 1 : i32
    %c8_i32_19 = arith.constant 8 : i32
    %54 = arith.muli %c1_i32, %c8_i32_19 : i32
    %55 = tpu.assume_multiple %54, 8 : i32
    %c0_20 = arith.constant 0 : index
    %c0_21 = arith.constant 0 : index
    %56 = vector.load %arg3[%c0_20, %c0_21] : memref<64x256xf32, #tpu.memory_space<vmem>>, vector<64x256xf32>
    %cst_22 = arith.constant dense<0.000000e+00> : vector<8x256xf32>
    %57 = tpu.matmul %33, %56, %cst_22 {dimension_numbers = #tpu.dot_dimension_numbers<[1], [0], [0], [1], [0, 0, 1, 1], [], []>} : vector<8x64xf32>, vector<64x256xf32>, vector<8x256xf32> -> vector<8x256xf32>
    %58 = arith.index_cast %55 : i32 to index
    %c0_23 = arith.constant 0 : index
    %59 = vector.load %arg11[%58, %c0_23] : memref<64x256xf32, #tpu.memory_space<vmem>>, vector<8x256xf32>
    %60 = arith.addf %57, %59 : vector<8x256xf32>
    %61 = vector.extract_strided_slice %60 {offsets = [0, 0], sizes = [8, 192], strides = [1, 1]} : vector<8x256xf32> to vector<8x192xf32>
    %62 = arith.negf %61 : vector<8x192xf32>
    %63 = math.exp %62 : vector<8x192xf32>
    %cst_24 = arith.constant 1.000000e+00 : f32
    %64 = vector.broadcast %cst_24 : f32 to vector<8x192xf32>
    %65 = arith.addf %64, %63 : vector<8x192xf32>
    %66 = arith.divf %64, %65 : vector<8x192xf32>
    %67 = vector.extract_strided_slice %60 {offsets = [0, 192], sizes = [8, 64], strides = [1, 1]} : vector<8x256xf32> to vector<8x64xf32>
    %68 = math.tanh %67 : vector<8x64xf32>
    %69 = vector.extract_strided_slice %66 {offsets = [0, 0], sizes = [8, 64], strides = [1, 1]} : vector<8x192xf32> to vector<8x64xf32>
    %70 = vector.extract_strided_slice %66 {offsets = [0, 64], sizes = [8, 64], strides = [1, 1]} : vector<8x192xf32> to vector<8x64xf32>
    %71 = vector.extract_strided_slice %66 {offsets = [0, 128], sizes = [8, 64], strides = [1, 1]} : vector<8x192xf32> to vector<8x64xf32>
    %72 = arith.mulf %70, %31 : vector<8x64xf32>
    %73 = arith.mulf %69, %68 : vector<8x64xf32>
    %74 = arith.addf %72, %73 : vector<8x64xf32>
    %75 = math.tanh %74 : vector<8x64xf32>
    %76 = arith.mulf %71, %75 : vector<8x64xf32>
    %77 = tpu.concatenate %76, %53 in 1 : vector<8x64xf32>, vector<8x64xf32> -> vector<8x128xf32>
    %c0_25 = arith.constant 0 : index
    %c0_26 = arith.constant 0 : index
    %78 = vector.load %arg4[%c0_25, %c0_26] : memref<128x256xf32, #tpu.memory_space<vmem>>, vector<128x256xf32>
    %cst_27 = arith.constant dense<0.000000e+00> : vector<8x256xf32>
    %79 = tpu.matmul %77, %78, %cst_27 {dimension_numbers = #tpu.dot_dimension_numbers<[1], [0], [0], [1], [0, 0, 1, 1], [], []>} : vector<8x128xf32>, vector<128x256xf32>, vector<8x256xf32> -> vector<8x256xf32>
    %80 = arith.addf %79, %9 : vector<8x256xf32>
    %81 = vector.extract_strided_slice %80 {offsets = [0, 0], sizes = [8, 192], strides = [1, 1]} : vector<8x256xf32> to vector<8x192xf32>
    %82 = arith.negf %81 : vector<8x192xf32>
    %83 = math.exp %82 : vector<8x192xf32>
    %cst_28 = arith.constant 1.000000e+00 : f32
    %84 = vector.broadcast %cst_28 : f32 to vector<8x192xf32>
    %85 = arith.addf %84, %83 : vector<8x192xf32>
    %86 = arith.divf %84, %85 : vector<8x192xf32>
    %87 = vector.extract_strided_slice %80 {offsets = [0, 192], sizes = [8, 64], strides = [1, 1]} : vector<8x256xf32> to vector<8x64xf32>
    %88 = math.tanh %87 : vector<8x64xf32>
    %89 = vector.extract_strided_slice %86 {offsets = [0, 0], sizes = [8, 64], strides = [1, 1]} : vector<8x192xf32> to vector<8x64xf32>
    %90 = vector.extract_strided_slice %86 {offsets = [0, 64], sizes = [8, 64], strides = [1, 1]} : vector<8x192xf32> to vector<8x64xf32>
    %91 = vector.extract_strided_slice %86 {offsets = [0, 128], sizes = [8, 64], strides = [1, 1]} : vector<8x192xf32> to vector<8x64xf32>
    %92 = arith.mulf %90, %51 : vector<8x64xf32>
    %93 = arith.mulf %89, %88 : vector<8x64xf32>
    %94 = arith.addf %92, %93 : vector<8x64xf32>
    %95 = math.tanh %94 : vector<8x64xf32>
    %96 = arith.mulf %91, %95 : vector<8x64xf32>
    %c2_i32 = arith.constant 2 : i32
    %c8_i32_29 = arith.constant 8 : i32
    %97 = arith.muli %c2_i32, %c8_i32_29 : i32
    %98 = tpu.assume_multiple %97, 8 : i32
    %c0_30 = arith.constant 0 : index
    %c0_31 = arith.constant 0 : index
    %99 = vector.load %arg3[%c0_30, %c0_31] : memref<64x256xf32, #tpu.memory_space<vmem>>, vector<64x256xf32>
    %cst_32 = arith.constant dense<0.000000e+00> : vector<8x256xf32>
    %100 = tpu.matmul %76, %99, %cst_32 {dimension_numbers = #tpu.dot_dimension_numbers<[1], [0], [0], [1], [0, 0, 1, 1], [], []>} : vector<8x64xf32>, vector<64x256xf32>, vector<8x256xf32> -> vector<8x256xf32>
    %101 = arith.index_cast %98 : i32 to index
    %c0_33 = arith.constant 0 : index
    %102 = vector.load %arg11[%101, %c0_33] : memref<64x256xf32, #tpu.memory_space<vmem>>, vector<8x256xf32>
    %103 = arith.addf %100, %102 : vector<8x256xf32>
    %104 = vector.extract_strided_slice %103 {offsets = [0, 0], sizes = [8, 192], strides = [1, 1]} : vector<8x256xf32> to vector<8x192xf32>
    %105 = arith.negf %104 : vector<8x192xf32>
    %106 = math.exp %105 : vector<8x192xf32>
    %cst_34 = arith.constant 1.000000e+00 : f32
    %107 = vector.broadcast %cst_34 : f32 to vector<8x192xf32>
    %108 = arith.addf %107, %106 : vector<8x192xf32>
    %109 = arith.divf %107, %108 : vector<8x192xf32>
    %110 = vector.extract_strided_slice %103 {offsets = [0, 192], sizes = [8, 64], strides = [1, 1]} : vector<8x256xf32> to vector<8x64xf32>
    %111 = math.tanh %110 : vector<8x64xf32>
    %112 = vector.extract_strided_slice %109 {offsets = [0, 0], sizes = [8, 64], strides = [1, 1]} : vector<8x192xf32> to vector<8x64xf32>
    %113 = vector.extract_strided_slice %109 {offsets = [0, 64], sizes = [8, 64], strides = [1, 1]} : vector<8x192xf32> to vector<8x64xf32>
    %114 = vector.extract_strided_slice %109 {offsets = [0, 128], sizes = [8, 64], strides = [1, 1]} : vector<8x192xf32> to vector<8x64xf32>
    %115 = arith.mulf %113, %74 : vector<8x64xf32>
    %116 = arith.mulf %112, %111 : vector<8x64xf32>
    %117 = arith.addf %115, %116 : vector<8x64xf32>
    %118 = math.tanh %117 : vector<8x64xf32>
    %119 = arith.mulf %114, %118 : vector<8x64xf32>
    %120 = tpu.concatenate %119, %96 in 1 : vector<8x64xf32>, vector<8x64xf32> -> vector<8x128xf32>
    %c0_35 = arith.constant 0 : index
    %c0_36 = arith.constant 0 : index
    %121 = vector.load %arg4[%c0_35, %c0_36] : memref<128x256xf32, #tpu.memory_space<vmem>>, vector<128x256xf32>
    %cst_37 = arith.constant dense<0.000000e+00> : vector<8x256xf32>
    %122 = tpu.matmul %120, %121, %cst_37 {dimension_numbers = #tpu.dot_dimension_numbers<[1], [0], [0], [1], [0, 0, 1, 1], [], []>} : vector<8x128xf32>, vector<128x256xf32>, vector<8x256xf32> -> vector<8x256xf32>
    %123 = arith.addf %122, %9 : vector<8x256xf32>
    %124 = vector.extract_strided_slice %123 {offsets = [0, 0], sizes = [8, 192], strides = [1, 1]} : vector<8x256xf32> to vector<8x192xf32>
    %125 = arith.negf %124 : vector<8x192xf32>
    %126 = math.exp %125 : vector<8x192xf32>
    %cst_38 = arith.constant 1.000000e+00 : f32
    %127 = vector.broadcast %cst_38 : f32 to vector<8x192xf32>
    %128 = arith.addf %127, %126 : vector<8x192xf32>
    %129 = arith.divf %127, %128 : vector<8x192xf32>
    %130 = vector.extract_strided_slice %123 {offsets = [0, 192], sizes = [8, 64], strides = [1, 1]} : vector<8x256xf32> to vector<8x64xf32>
    %131 = math.tanh %130 : vector<8x64xf32>
    %132 = vector.extract_strided_slice %129 {offsets = [0, 0], sizes = [8, 64], strides = [1, 1]} : vector<8x192xf32> to vector<8x64xf32>
    %133 = vector.extract_strided_slice %129 {offsets = [0, 64], sizes = [8, 64], strides = [1, 1]} : vector<8x192xf32> to vector<8x64xf32>
    %134 = vector.extract_strided_slice %129 {offsets = [0, 128], sizes = [8, 64], strides = [1, 1]} : vector<8x192xf32> to vector<8x64xf32>
    %135 = arith.mulf %133, %94 : vector<8x64xf32>
    %136 = arith.mulf %132, %131 : vector<8x64xf32>
    %137 = arith.addf %135, %136 : vector<8x64xf32>
    %138 = math.tanh %137 : vector<8x64xf32>
    %139 = arith.mulf %134, %138 : vector<8x64xf32>
    %c3_i32 = arith.constant 3 : i32
    %c8_i32_39 = arith.constant 8 : i32
    %140 = arith.muli %c3_i32, %c8_i32_39 : i32
    %141 = tpu.assume_multiple %140, 8 : i32
    %c0_40 = arith.constant 0 : index
    %c0_41 = arith.constant 0 : index
    %142 = vector.load %arg3[%c0_40, %c0_41] : memref<64x256xf32, #tpu.memory_space<vmem>>, vector<64x256xf32>
    %cst_42 = arith.constant dense<0.000000e+00> : vector<8x256xf32>
    %143 = tpu.matmul %119, %142, %cst_42 {dimension_numbers = #tpu.dot_dimension_numbers<[1], [0], [0], [1], [0, 0, 1, 1], [], []>} : vector<8x64xf32>, vector<64x256xf32>, vector<8x256xf32> -> vector<8x256xf32>
    %144 = arith.index_cast %141 : i32 to index
    %c0_43 = arith.constant 0 : index
    %145 = vector.load %arg11[%144, %c0_43] : memref<64x256xf32, #tpu.memory_space<vmem>>, vector<8x256xf32>
    %146 = arith.addf %143, %145 : vector<8x256xf32>
    %147 = vector.extract_strided_slice %146 {offsets = [0, 0], sizes = [8, 192], strides = [1, 1]} : vector<8x256xf32> to vector<8x192xf32>
    %148 = arith.negf %147 : vector<8x192xf32>
    %149 = math.exp %148 : vector<8x192xf32>
    %cst_44 = arith.constant 1.000000e+00 : f32
    %150 = vector.broadcast %cst_44 : f32 to vector<8x192xf32>
    %151 = arith.addf %150, %149 : vector<8x192xf32>
    %152 = arith.divf %150, %151 : vector<8x192xf32>
    %153 = vector.extract_strided_slice %146 {offsets = [0, 192], sizes = [8, 64], strides = [1, 1]} : vector<8x256xf32> to vector<8x64xf32>
    %154 = math.tanh %153 : vector<8x64xf32>
    %155 = vector.extract_strided_slice %152 {offsets = [0, 0], sizes = [8, 64], strides = [1, 1]} : vector<8x192xf32> to vector<8x64xf32>
    %156 = vector.extract_strided_slice %152 {offsets = [0, 64], sizes = [8, 64], strides = [1, 1]} : vector<8x192xf32> to vector<8x64xf32>
    %157 = vector.extract_strided_slice %152 {offsets = [0, 128], sizes = [8, 64], strides = [1, 1]} : vector<8x192xf32> to vector<8x64xf32>
    %158 = arith.mulf %156, %117 : vector<8x64xf32>
    %159 = arith.mulf %155, %154 : vector<8x64xf32>
    %160 = arith.addf %158, %159 : vector<8x64xf32>
    %161 = math.tanh %160 : vector<8x64xf32>
    %162 = arith.mulf %157, %161 : vector<8x64xf32>
    %163 = tpu.concatenate %162, %139 in 1 : vector<8x64xf32>, vector<8x64xf32> -> vector<8x128xf32>
    %c0_45 = arith.constant 0 : index
    %c0_46 = arith.constant 0 : index
    %164 = vector.load %arg4[%c0_45, %c0_46] : memref<128x256xf32, #tpu.memory_space<vmem>>, vector<128x256xf32>
    %cst_47 = arith.constant dense<0.000000e+00> : vector<8x256xf32>
    %165 = tpu.matmul %163, %164, %cst_47 {dimension_numbers = #tpu.dot_dimension_numbers<[1], [0], [0], [1], [0, 0, 1, 1], [], []>} : vector<8x128xf32>, vector<128x256xf32>, vector<8x256xf32> -> vector<8x256xf32>
    %166 = arith.addf %165, %9 : vector<8x256xf32>
    %167 = vector.extract_strided_slice %166 {offsets = [0, 0], sizes = [8, 192], strides = [1, 1]} : vector<8x256xf32> to vector<8x192xf32>
    %168 = arith.negf %167 : vector<8x192xf32>
    %169 = math.exp %168 : vector<8x192xf32>
    %cst_48 = arith.constant 1.000000e+00 : f32
    %170 = vector.broadcast %cst_48 : f32 to vector<8x192xf32>
    %171 = arith.addf %170, %169 : vector<8x192xf32>
    %172 = arith.divf %170, %171 : vector<8x192xf32>
    %173 = vector.extract_strided_slice %166 {offsets = [0, 192], sizes = [8, 64], strides = [1, 1]} : vector<8x256xf32> to vector<8x64xf32>
    %174 = math.tanh %173 : vector<8x64xf32>
    %175 = vector.extract_strided_slice %172 {offsets = [0, 0], sizes = [8, 64], strides = [1, 1]} : vector<8x192xf32> to vector<8x64xf32>
    %176 = vector.extract_strided_slice %172 {offsets = [0, 64], sizes = [8, 64], strides = [1, 1]} : vector<8x192xf32> to vector<8x64xf32>
    %177 = vector.extract_strided_slice %172 {offsets = [0, 128], sizes = [8, 64], strides = [1, 1]} : vector<8x192xf32> to vector<8x64xf32>
    %178 = arith.mulf %176, %137 : vector<8x64xf32>
    %179 = arith.mulf %175, %174 : vector<8x64xf32>
    %180 = arith.addf %178, %179 : vector<8x64xf32>
    %181 = math.tanh %180 : vector<8x64xf32>
    %182 = arith.mulf %177, %181 : vector<8x64xf32>
    %c4_i32 = arith.constant 4 : i32
    %c8_i32_49 = arith.constant 8 : i32
    %183 = arith.muli %c4_i32, %c8_i32_49 : i32
    %184 = tpu.assume_multiple %183, 8 : i32
    %c0_50 = arith.constant 0 : index
    %c0_51 = arith.constant 0 : index
    %185 = vector.load %arg3[%c0_50, %c0_51] : memref<64x256xf32, #tpu.memory_space<vmem>>, vector<64x256xf32>
    %cst_52 = arith.constant dense<0.000000e+00> : vector<8x256xf32>
    %186 = tpu.matmul %162, %185, %cst_52 {dimension_numbers = #tpu.dot_dimension_numbers<[1], [0], [0], [1], [0, 0, 1, 1], [], []>} : vector<8x64xf32>, vector<64x256xf32>, vector<8x256xf32> -> vector<8x256xf32>
    %187 = arith.index_cast %184 : i32 to index
    %c0_53 = arith.constant 0 : index
    %188 = vector.load %arg11[%187, %c0_53] : memref<64x256xf32, #tpu.memory_space<vmem>>, vector<8x256xf32>
    %189 = arith.addf %186, %188 : vector<8x256xf32>
    %190 = vector.extract_strided_slice %189 {offsets = [0, 0], sizes = [8, 192], strides = [1, 1]} : vector<8x256xf32> to vector<8x192xf32>
    %191 = arith.negf %190 : vector<8x192xf32>
    %192 = math.exp %191 : vector<8x192xf32>
    %cst_54 = arith.constant 1.000000e+00 : f32
    %193 = vector.broadcast %cst_54 : f32 to vector<8x192xf32>
    %194 = arith.addf %193, %192 : vector<8x192xf32>
    %195 = arith.divf %193, %194 : vector<8x192xf32>
    %196 = vector.extract_strided_slice %189 {offsets = [0, 192], sizes = [8, 64], strides = [1, 1]} : vector<8x256xf32> to vector<8x64xf32>
    %197 = math.tanh %196 : vector<8x64xf32>
    %198 = vector.extract_strided_slice %195 {offsets = [0, 0], sizes = [8, 64], strides = [1, 1]} : vector<8x192xf32> to vector<8x64xf32>
    %199 = vector.extract_strided_slice %195 {offsets = [0, 64], sizes = [8, 64], strides = [1, 1]} : vector<8x192xf32> to vector<8x64xf32>
    %200 = vector.extract_strided_slice %195 {offsets = [0, 128], sizes = [8, 64], strides = [1, 1]} : vector<8x192xf32> to vector<8x64xf32>
    %201 = arith.mulf %199, %160 : vector<8x64xf32>
    %202 = arith.mulf %198, %197 : vector<8x64xf32>
    %203 = arith.addf %201, %202 : vector<8x64xf32>
    %204 = math.tanh %203 : vector<8x64xf32>
    %205 = arith.mulf %200, %204 : vector<8x64xf32>
    %206 = tpu.concatenate %205, %182 in 1 : vector<8x64xf32>, vector<8x64xf32> -> vector<8x128xf32>
    %c0_55 = arith.constant 0 : index
    %c0_56 = arith.constant 0 : index
    %207 = vector.load %arg4[%c0_55, %c0_56] : memref<128x256xf32, #tpu.memory_space<vmem>>, vector<128x256xf32>
    %cst_57 = arith.constant dense<0.000000e+00> : vector<8x256xf32>
    %208 = tpu.matmul %206, %207, %cst_57 {dimension_numbers = #tpu.dot_dimension_numbers<[1], [0], [0], [1], [0, 0, 1, 1], [], []>} : vector<8x128xf32>, vector<128x256xf32>, vector<8x256xf32> -> vector<8x256xf32>
    %209 = arith.addf %208, %9 : vector<8x256xf32>
    %210 = vector.extract_strided_slice %209 {offsets = [0, 0], sizes = [8, 192], strides = [1, 1]} : vector<8x256xf32> to vector<8x192xf32>
    %211 = arith.negf %210 : vector<8x192xf32>
    %212 = math.exp %211 : vector<8x192xf32>
    %cst_58 = arith.constant 1.000000e+00 : f32
    %213 = vector.broadcast %cst_58 : f32 to vector<8x192xf32>
    %214 = arith.addf %213, %212 : vector<8x192xf32>
    %215 = arith.divf %213, %214 : vector<8x192xf32>
    %216 = vector.extract_strided_slice %209 {offsets = [0, 192], sizes = [8, 64], strides = [1, 1]} : vector<8x256xf32> to vector<8x64xf32>
    %217 = math.tanh %216 : vector<8x64xf32>
    %218 = vector.extract_strided_slice %215 {offsets = [0, 0], sizes = [8, 64], strides = [1, 1]} : vector<8x192xf32> to vector<8x64xf32>
    %219 = vector.extract_strided_slice %215 {offsets = [0, 64], sizes = [8, 64], strides = [1, 1]} : vector<8x192xf32> to vector<8x64xf32>
    %220 = vector.extract_strided_slice %215 {offsets = [0, 128], sizes = [8, 64], strides = [1, 1]} : vector<8x192xf32> to vector<8x64xf32>
    %221 = arith.mulf %219, %180 : vector<8x64xf32>
    %222 = arith.mulf %218, %217 : vector<8x64xf32>
    %223 = arith.addf %221, %222 : vector<8x64xf32>
    %224 = math.tanh %223 : vector<8x64xf32>
    %225 = arith.mulf %220, %224 : vector<8x64xf32>
    %c5_i32 = arith.constant 5 : i32
    %c8_i32_59 = arith.constant 8 : i32
    %226 = arith.muli %c5_i32, %c8_i32_59 : i32
    %227 = tpu.assume_multiple %226, 8 : i32
    %c0_60 = arith.constant 0 : index
    %c0_61 = arith.constant 0 : index
    %228 = vector.load %arg3[%c0_60, %c0_61] : memref<64x256xf32, #tpu.memory_space<vmem>>, vector<64x256xf32>
    %cst_62 = arith.constant dense<0.000000e+00> : vector<8x256xf32>
    %229 = tpu.matmul %205, %228, %cst_62 {dimension_numbers = #tpu.dot_dimension_numbers<[1], [0], [0], [1], [0, 0, 1, 1], [], []>} : vector<8x64xf32>, vector<64x256xf32>, vector<8x256xf32> -> vector<8x256xf32>
    %230 = arith.index_cast %227 : i32 to index
    %c0_63 = arith.constant 0 : index
    %231 = vector.load %arg11[%230, %c0_63] : memref<64x256xf32, #tpu.memory_space<vmem>>, vector<8x256xf32>
    %232 = arith.addf %229, %231 : vector<8x256xf32>
    %233 = vector.extract_strided_slice %232 {offsets = [0, 0], sizes = [8, 192], strides = [1, 1]} : vector<8x256xf32> to vector<8x192xf32>
    %234 = arith.negf %233 : vector<8x192xf32>
    %235 = math.exp %234 : vector<8x192xf32>
    %cst_64 = arith.constant 1.000000e+00 : f32
    %236 = vector.broadcast %cst_64 : f32 to vector<8x192xf32>
    %237 = arith.addf %236, %235 : vector<8x192xf32>
    %238 = arith.divf %236, %237 : vector<8x192xf32>
    %239 = vector.extract_strided_slice %232 {offsets = [0, 192], sizes = [8, 64], strides = [1, 1]} : vector<8x256xf32> to vector<8x64xf32>
    %240 = math.tanh %239 : vector<8x64xf32>
    %241 = vector.extract_strided_slice %238 {offsets = [0, 0], sizes = [8, 64], strides = [1, 1]} : vector<8x192xf32> to vector<8x64xf32>
    %242 = vector.extract_strided_slice %238 {offsets = [0, 64], sizes = [8, 64], strides = [1, 1]} : vector<8x192xf32> to vector<8x64xf32>
    %243 = vector.extract_strided_slice %238 {offsets = [0, 128], sizes = [8, 64], strides = [1, 1]} : vector<8x192xf32> to vector<8x64xf32>
    %244 = arith.mulf %242, %203 : vector<8x64xf32>
    %245 = arith.mulf %241, %240 : vector<8x64xf32>
    %246 = arith.addf %244, %245 : vector<8x64xf32>
    %247 = math.tanh %246 : vector<8x64xf32>
    %248 = arith.mulf %243, %247 : vector<8x64xf32>
    %249 = tpu.concatenate %248, %225 in 1 : vector<8x64xf32>, vector<8x64xf32> -> vector<8x128xf32>
    %c0_65 = arith.constant 0 : index
    %c0_66 = arith.constant 0 : index
    %250 = vector.load %arg4[%c0_65, %c0_66] : memref<128x256xf32, #tpu.memory_space<vmem>>, vector<128x256xf32>
    %cst_67 = arith.constant dense<0.000000e+00> : vector<8x256xf32>
    %251 = tpu.matmul %249, %250, %cst_67 {dimension_numbers = #tpu.dot_dimension_numbers<[1], [0], [0], [1], [0, 0, 1, 1], [], []>} : vector<8x128xf32>, vector<128x256xf32>, vector<8x256xf32> -> vector<8x256xf32>
    %252 = arith.addf %251, %9 : vector<8x256xf32>
    %253 = vector.extract_strided_slice %252 {offsets = [0, 0], sizes = [8, 192], strides = [1, 1]} : vector<8x256xf32> to vector<8x192xf32>
    %254 = arith.negf %253 : vector<8x192xf32>
    %255 = math.exp %254 : vector<8x192xf32>
    %cst_68 = arith.constant 1.000000e+00 : f32
    %256 = vector.broadcast %cst_68 : f32 to vector<8x192xf32>
    %257 = arith.addf %256, %255 : vector<8x192xf32>
    %258 = arith.divf %256, %257 : vector<8x192xf32>
    %259 = vector.extract_strided_slice %252 {offsets = [0, 192], sizes = [8, 64], strides = [1, 1]} : vector<8x256xf32> to vector<8x64xf32>
    %260 = math.tanh %259 : vector<8x64xf32>
    %261 = vector.extract_strided_slice %258 {offsets = [0, 0], sizes = [8, 64], strides = [1, 1]} : vector<8x192xf32> to vector<8x64xf32>
    %262 = vector.extract_strided_slice %258 {offsets = [0, 64], sizes = [8, 64], strides = [1, 1]} : vector<8x192xf32> to vector<8x64xf32>
    %263 = vector.extract_strided_slice %258 {offsets = [0, 128], sizes = [8, 64], strides = [1, 1]} : vector<8x192xf32> to vector<8x64xf32>
    %264 = arith.mulf %262, %223 : vector<8x64xf32>
    %265 = arith.mulf %261, %260 : vector<8x64xf32>
    %266 = arith.addf %264, %265 : vector<8x64xf32>
    %267 = math.tanh %266 : vector<8x64xf32>
    %268 = arith.mulf %263, %267 : vector<8x64xf32>
    %c6_i32 = arith.constant 6 : i32
    %c8_i32_69 = arith.constant 8 : i32
    %269 = arith.muli %c6_i32, %c8_i32_69 : i32
    %270 = tpu.assume_multiple %269, 8 : i32
    %c0_70 = arith.constant 0 : index
    %c0_71 = arith.constant 0 : index
    %271 = vector.load %arg3[%c0_70, %c0_71] : memref<64x256xf32, #tpu.memory_space<vmem>>, vector<64x256xf32>
    %cst_72 = arith.constant dense<0.000000e+00> : vector<8x256xf32>
    %272 = tpu.matmul %248, %271, %cst_72 {dimension_numbers = #tpu.dot_dimension_numbers<[1], [0], [0], [1], [0, 0, 1, 1], [], []>} : vector<8x64xf32>, vector<64x256xf32>, vector<8x256xf32> -> vector<8x256xf32>
    %273 = arith.index_cast %270 : i32 to index
    %c0_73 = arith.constant 0 : index
    %274 = vector.load %arg11[%273, %c0_73] : memref<64x256xf32, #tpu.memory_space<vmem>>, vector<8x256xf32>
    %275 = arith.addf %272, %274 : vector<8x256xf32>
    %276 = vector.extract_strided_slice %275 {offsets = [0, 0], sizes = [8, 192], strides = [1, 1]} : vector<8x256xf32> to vector<8x192xf32>
    %277 = arith.negf %276 : vector<8x192xf32>
    %278 = math.exp %277 : vector<8x192xf32>
    %cst_74 = arith.constant 1.000000e+00 : f32
    %279 = vector.broadcast %cst_74 : f32 to vector<8x192xf32>
    %280 = arith.addf %279, %278 : vector<8x192xf32>
    %281 = arith.divf %279, %280 : vector<8x192xf32>
    %282 = vector.extract_strided_slice %275 {offsets = [0, 192], sizes = [8, 64], strides = [1, 1]} : vector<8x256xf32> to vector<8x64xf32>
    %283 = math.tanh %282 : vector<8x64xf32>
    %284 = vector.extract_strided_slice %281 {offsets = [0, 0], sizes = [8, 64], strides = [1, 1]} : vector<8x192xf32> to vector<8x64xf32>
    %285 = vector.extract_strided_slice %281 {offsets = [0, 64], sizes = [8, 64], strides = [1, 1]} : vector<8x192xf32> to vector<8x64xf32>
    %286 = vector.extract_strided_slice %281 {offsets = [0, 128], sizes = [8, 64], strides = [1, 1]} : vector<8x192xf32> to vector<8x64xf32>
    %287 = arith.mulf %285, %246 : vector<8x64xf32>
    %288 = arith.mulf %284, %283 : vector<8x64xf32>
    %289 = arith.addf %287, %288 : vector<8x64xf32>
    %290 = math.tanh %289 : vector<8x64xf32>
    %291 = arith.mulf %286, %290 : vector<8x64xf32>
    %292 = tpu.concatenate %291, %268 in 1 : vector<8x64xf32>, vector<8x64xf32> -> vector<8x128xf32>
    %c0_75 = arith.constant 0 : index
    %c0_76 = arith.constant 0 : index
    %293 = vector.load %arg4[%c0_75, %c0_76] : memref<128x256xf32, #tpu.memory_space<vmem>>, vector<128x256xf32>
    %cst_77 = arith.constant dense<0.000000e+00> : vector<8x256xf32>
    %294 = tpu.matmul %292, %293, %cst_77 {dimension_numbers = #tpu.dot_dimension_numbers<[1], [0], [0], [1], [0, 0, 1, 1], [], []>} : vector<8x128xf32>, vector<128x256xf32>, vector<8x256xf32> -> vector<8x256xf32>
    %295 = arith.addf %294, %9 : vector<8x256xf32>
    %296 = vector.extract_strided_slice %295 {offsets = [0, 0], sizes = [8, 192], strides = [1, 1]} : vector<8x256xf32> to vector<8x192xf32>
    %297 = arith.negf %296 : vector<8x192xf32>
    %298 = math.exp %297 : vector<8x192xf32>
    %cst_78 = arith.constant 1.000000e+00 : f32
    %299 = vector.broadcast %cst_78 : f32 to vector<8x192xf32>
    %300 = arith.addf %299, %298 : vector<8x192xf32>
    %301 = arith.divf %299, %300 : vector<8x192xf32>
    %302 = vector.extract_strided_slice %295 {offsets = [0, 192], sizes = [8, 64], strides = [1, 1]} : vector<8x256xf32> to vector<8x64xf32>
    %303 = math.tanh %302 : vector<8x64xf32>
    %304 = vector.extract_strided_slice %301 {offsets = [0, 0], sizes = [8, 64], strides = [1, 1]} : vector<8x192xf32> to vector<8x64xf32>
    %305 = vector.extract_strided_slice %301 {offsets = [0, 64], sizes = [8, 64], strides = [1, 1]} : vector<8x192xf32> to vector<8x64xf32>
    %306 = vector.extract_strided_slice %301 {offsets = [0, 128], sizes = [8, 64], strides = [1, 1]} : vector<8x192xf32> to vector<8x64xf32>
    %307 = arith.mulf %305, %266 : vector<8x64xf32>
    %308 = arith.mulf %304, %303 : vector<8x64xf32>
    %309 = arith.addf %307, %308 : vector<8x64xf32>
    %310 = math.tanh %309 : vector<8x64xf32>
    %311 = arith.mulf %306, %310 : vector<8x64xf32>
    %c7_i32 = arith.constant 7 : i32
    %c8_i32_79 = arith.constant 8 : i32
    %312 = arith.muli %c7_i32, %c8_i32_79 : i32
    %313 = tpu.assume_multiple %312, 8 : i32
    %c0_80 = arith.constant 0 : index
    %c0_81 = arith.constant 0 : index
    %314 = vector.load %arg3[%c0_80, %c0_81] : memref<64x256xf32, #tpu.memory_space<vmem>>, vector<64x256xf32>
    %cst_82 = arith.constant dense<0.000000e+00> : vector<8x256xf32>
    %315 = tpu.matmul %291, %314, %cst_82 {dimension_numbers = #tpu.dot_dimension_numbers<[1], [0], [0], [1], [0, 0, 1, 1], [], []>} : vector<8x64xf32>, vector<64x256xf32>, vector<8x256xf32> -> vector<8x256xf32>
    %316 = arith.index_cast %313 : i32 to index
    %c0_83 = arith.constant 0 : index
    %317 = vector.load %arg11[%316, %c0_83] : memref<64x256xf32, #tpu.memory_space<vmem>>, vector<8x256xf32>
    %318 = arith.addf %315, %317 : vector<8x256xf32>
    %319 = vector.extract_strided_slice %318 {offsets = [0, 0], sizes = [8, 192], strides = [1, 1]} : vector<8x256xf32> to vector<8x192xf32>
    %320 = arith.negf %319 : vector<8x192xf32>
    %321 = math.exp %320 : vector<8x192xf32>
    %cst_84 = arith.constant 1.000000e+00 : f32
    %322 = vector.broadcast %cst_84 : f32 to vector<8x192xf32>
    %323 = arith.addf %322, %321 : vector<8x192xf32>
    %324 = arith.divf %322, %323 : vector<8x192xf32>
    %325 = vector.extract_strided_slice %318 {offsets = [0, 192], sizes = [8, 64], strides = [1, 1]} : vector<8x256xf32> to vector<8x64xf32>
    %326 = math.tanh %325 : vector<8x64xf32>
    %327 = vector.extract_strided_slice %324 {offsets = [0, 0], sizes = [8, 64], strides = [1, 1]} : vector<8x192xf32> to vector<8x64xf32>
    %328 = vector.extract_strided_slice %324 {offsets = [0, 64], sizes = [8, 64], strides = [1, 1]} : vector<8x192xf32> to vector<8x64xf32>
    %329 = vector.extract_strided_slice %324 {offsets = [0, 128], sizes = [8, 64], strides = [1, 1]} : vector<8x192xf32> to vector<8x64xf32>
    %330 = arith.mulf %328, %289 : vector<8x64xf32>
    %331 = arith.mulf %327, %326 : vector<8x64xf32>
    %332 = arith.addf %330, %331 : vector<8x64xf32>
    %333 = math.tanh %332 : vector<8x64xf32>
    %334 = arith.mulf %329, %333 : vector<8x64xf32>
    %335 = tpu.concatenate %334, %311 in 1 : vector<8x64xf32>, vector<8x64xf32> -> vector<8x128xf32>
    %c0_85 = arith.constant 0 : index
    %c0_86 = arith.constant 0 : index
    %336 = vector.load %arg4[%c0_85, %c0_86] : memref<128x256xf32, #tpu.memory_space<vmem>>, vector<128x256xf32>
    %cst_87 = arith.constant dense<0.000000e+00> : vector<8x256xf32>
    %337 = tpu.matmul %335, %336, %cst_87 {dimension_numbers = #tpu.dot_dimension_numbers<[1], [0], [0], [1], [0, 0, 1, 1], [], []>} : vector<8x128xf32>, vector<128x256xf32>, vector<8x256xf32> -> vector<8x256xf32>
    %338 = arith.addf %337, %9 : vector<8x256xf32>
    %339 = vector.extract_strided_slice %338 {offsets = [0, 0], sizes = [8, 192], strides = [1, 1]} : vector<8x256xf32> to vector<8x192xf32>
    %340 = arith.negf %339 : vector<8x192xf32>
    %341 = math.exp %340 : vector<8x192xf32>
    %cst_88 = arith.constant 1.000000e+00 : f32
    %342 = vector.broadcast %cst_88 : f32 to vector<8x192xf32>
    %343 = arith.addf %342, %341 : vector<8x192xf32>
    %344 = arith.divf %342, %343 : vector<8x192xf32>
    %345 = vector.extract_strided_slice %338 {offsets = [0, 192], sizes = [8, 64], strides = [1, 1]} : vector<8x256xf32> to vector<8x64xf32>
    %346 = math.tanh %345 : vector<8x64xf32>
    %347 = vector.extract_strided_slice %344 {offsets = [0, 0], sizes = [8, 64], strides = [1, 1]} : vector<8x192xf32> to vector<8x64xf32>
    %348 = vector.extract_strided_slice %344 {offsets = [0, 64], sizes = [8, 64], strides = [1, 1]} : vector<8x192xf32> to vector<8x64xf32>
    %349 = vector.extract_strided_slice %344 {offsets = [0, 128], sizes = [8, 64], strides = [1, 1]} : vector<8x192xf32> to vector<8x64xf32>
    %350 = arith.mulf %348, %309 : vector<8x64xf32>
    %351 = arith.mulf %347, %346 : vector<8x64xf32>
    %352 = arith.addf %350, %351 : vector<8x64xf32>
    %353 = math.tanh %352 : vector<8x64xf32>
    %354 = arith.mulf %349, %353 : vector<8x64xf32>
    %c8_i32_89 = arith.constant 8 : i32
    %c0_90 = arith.constant 0 : index
    %c0_91 = arith.constant 0 : index
    %355 = vector.load %arg6[%c0_90, %c0_91] : memref<64x32xf32, #tpu.memory_space<vmem>>, vector<64x32xf32>
    %cst_92 = arith.constant dense<0.000000e+00> : vector<8x32xf32>
    %356 = tpu.matmul %354, %355, %cst_92 {dimension_numbers = #tpu.dot_dimension_numbers<[1], [0], [0], [1], [0, 0, 1, 1], [], []>} : vector<8x64xf32>, vector<64x32xf32>, vector<8x32xf32> -> vector<8x32xf32>
    %c0_93 = arith.constant 0 : index
    %c0_94 = arith.constant 0 : index
    %357 = vector.load %arg7[%c0_93, %c0_94] : memref<1x32xf32, #tpu.memory_space<vmem>>, vector<1x32xf32>
    %358 = vector.broadcast %357 : vector<1x32xf32> to vector<8x32xf32>
    %359 = arith.addf %356, %358 : vector<8x32xf32>
    %cst_95 = arith.constant 0.000000e+00 : f32
    %360 = vector.broadcast %cst_95 : f32 to vector<8x32xf32>
    %361 = arith.maximumf %359, %360 : vector<8x32xf32>
    %c0_96 = arith.constant 0 : index
    %c0_97 = arith.constant 0 : index
    %362 = vector.load %arg8[%c0_96, %c0_97] : memref<32x1xf32, #tpu.memory_space<vmem>>, vector<32x1xf32>
    %cst_98 = arith.constant dense<0.000000e+00> : vector<8x1xf32>
    %363 = tpu.matmul %361, %362, %cst_98 {dimension_numbers = #tpu.dot_dimension_numbers<[1], [0], [0], [1], [0, 0, 1, 1], [], []>} : vector<8x32xf32>, vector<32x1xf32>, vector<8x1xf32> -> vector<8x1xf32>
    %c0_99 = arith.constant 0 : index
    %c0_100 = arith.constant 0 : index
    %364 = vector.load %arg9[%c0_99, %c0_100] : memref<1x1xf32, #tpu.memory_space<vmem>>, vector<1x1xf32>
    %365 = vector.broadcast %364 : vector<1x1xf32> to vector<8x1xf32>
    %366 = arith.addf %363, %365 : vector<8x1xf32>
    %cst_101 = arith.constant 1.000000e+00 : f32
    %cst_102 = arith.constant 3.000000e+00 : f32
    %367 = vector.broadcast %cst_101 : f32 to vector<8x1xf32>
    %368 = arith.maximumf %367, %366 : vector<8x1xf32>
    %369 = vector.broadcast %cst_102 : f32 to vector<8x1xf32>
    %370 = arith.minimumf %369, %368 : vector<8x1xf32>
    %c0_103 = arith.constant 0 : index
    %c0_104 = arith.constant 0 : index
    %371 = vector.load %arg10[%c0_103, %c0_104] : memref<8x1xf32, #tpu.memory_space<vmem>>, vector<8x1xf32>
    tpu.vector_store %arg10[%c0_103, %c0_104], %370 {strides = array<i32>} : memref<8x1xf32, #tpu.memory_space<vmem>>, vector<8x1xf32>,
    return
  }
}

</mosaic_0001>

<llo_original>
// kernel: tpu_custom_call.1
$region0: #{tpu_custom_call.1}
  #allocation0 [shape = 'u32[]', space=smem, size = 0x4, offset = 0x4, fixed_abs, tag = 'smem constant byte address 0x4 - core index']
  #allocation1 [shape = 'u32[72,128]{1,0:T(1,128)}', space=vmem, size = 0x9000, scoped, tag = 'internal scratch']
  #allocation2 [shape = 'f32[64,256]{1,0:T(8,128)}', space=vmem, size = 0x10000, scoped, tag = 'scratch operand']
  #allocation3 [shape = 'f32[1,1]{1,0:T(1,128)S(1)}', space=vmem, size = 0x200, scoped, tag = 'scoped memory for tpu_custom_call.1']
  %s0 = inlined_call_operand.vmem [shape: f32[64,31], index: 0, kind: input, shape index: {}]
  %s1 = inlined_call_operand.hbm [shape: f32[31,256], index: 1, kind: input, shape index: {}]
  %s2 = inlined_call_operand.vmem [shape: f32[1,256], index: 2, kind: input, shape index: {}]
  %s3 = inlined_call_operand.vmem [shape: f32[64,256], index: 3, kind: input, shape index: {}]
  %s4 = inlined_call_operand.hbm [shape: f32[128,256], index: 4, kind: input, shape index: {}]
  %s5 = inlined_call_operand.vmem [shape: f32[1,256], index: 5, kind: input, shape index: {}]
  %s6 = inlined_call_operand.vmem [shape: f32[64,32], index: 6, kind: input, shape index: {}]
  %s7 = inlined_call_operand.vmem [shape: f32[1,32], index: 7, kind: input, shape index: {}]
  %s8 = inlined_call_operand.vmem [shape: f32[32,1], index: 8, kind: input, shape index: {}]
  %s9 = inlined_call_operand.<no memory space> [shape: f32[1,1], index: 9, kind: input, shape index: {}]
  %s10 = inlined_call_operand.vmem [shape: f32[8,1], index: 10, kind: output, shape index: {}]
  %s11 = sld [smem:[#allocation0]]
  $region58: #{tpu_custom_call.1} parent=0
    _
  %s13 = ssub.s32 1, %s11
  %s14 = scalar_select 0, %s13, %s11
  %v15 = vstv %s9
  %16 = vst [vmem:[#allocation3] sm:$0x1] %v15
  $region1: #{tpu_custom_call.1} parent=0
    #allocation4 [shape = 'u8[32768]{0}', space=vmem, size = 0x8000, scoped, tag = 'input window, operand 1, single buffered']
    #allocation5 [shape = 's32[1]{0}', space=sflag, size = 0x4, scoped, tag = 'scoped memory for tpu_custom_call.1']
    #allocation6 [shape = 'u8[131072]{0}', space=vmem, size = 0x20000, scoped, tag = 'input window, operand 4, single buffered']
    #allocation7 [shape = 's32[1]{0}', space=sflag, size = 0x4, scoped, tag = 'scoped memory for tpu_custom_call.1']
    %17 = vsyncpa [#allocation5], 0
    %18 = vsyncpa [#allocation7], 0
    // Predicated region
    $region2: #{tpu_custom_call.1} parent=1 // pred_check
      _
    $region3: #{tpu_custom_call.1} parent=1 // pred_check_branch
      %20 = sbr.rel (0) target = $region5
    $region4: #{tpu_custom_call.1} parent=1 // pred_region
      _
    $region5: #{tpu_custom_call.1} parent=1 // pred_fallthru
      _
    // Predicated region
    $region6: #{tpu_custom_call.1} parent=1 // pred_check
      _
    $region7: #{tpu_custom_call.1} parent=1 // pred_check_branch
      %22 = sbr.rel (0) target = $region9
    $region8: #{tpu_custom_call.1} parent=1 // pred_region
      %24 = vsyncadd [#allocation5], 0
      %s25 = sshll.u32 %s1, 4
      %s26 = int_to_ptr.hbm [resolvable:$true] %s25
      %s27 = sshll.u32 [#allocation4], 4
      %s28 = int_to_ptr.vmem [resolvable:$true] %s27
      %33 = dma.hbm_to_vmem [thread:$0]  %s26, 1024, %s28, [#allocation5], 256, 256, 16
    $region9: #{tpu_custom_call.1} parent=1 // pred_fallthru
      _
    // Predicated region
    $region10: #{tpu_custom_call.1} parent=1 // pred_check
      _
    $region11: #{tpu_custom_call.1} parent=1 // pred_check_branch
      %35 = sbr.rel (0) target = $region13
    $region12: #{tpu_custom_call.1} parent=1 // pred_region
      _
    $region13: #{tpu_custom_call.1} parent=1 // pred_fallthru
      _
    // Predicated region
    $region14: #{tpu_custom_call.1} parent=1 // pred_check
      _
    $region15: #{tpu_custom_call.1} parent=1 // pred_check_branch
      %37 = sbr.rel (0) target = $region17
    $region16: #{tpu_custom_call.1} parent=1 // pred_region
      _
    $region17: #{tpu_custom_call.1} parent=1 // pred_fallthru
      _
    // Predicated region
    $region18: #{tpu_custom_call.1} parent=1 // pred_check
      _
    $region19: #{tpu_custom_call.1} parent=1 // pred_check_branch
      %39 = sbr.rel (0) target = $region21
    $region20: #{tpu_custom_call.1} parent=1 // pred_region
      %41 = vsyncadd [#allocation7], 0
      %s42 = sshll.u32 %s4, 4
      %s43 = int_to_ptr.hbm [resolvable:$true] %s42
      %s44 = sshll.u32 [#allocation6], 4
      %s45 = int_to_ptr.vmem [resolvable:$true] %s44
      %50 = dma.hbm_to_vmem [thread:$0]  %s43, 4096, %s45, [#allocation7], 256, 256, 16
    $region21: #{tpu_custom_call.1} parent=1 // pred_fallthru
      _
    // Predicated region
    $region22: #{tpu_custom_call.1} parent=1 // pred_check
      _
    $region23: #{tpu_custom_call.1} parent=1 // pred_check_branch
      %52 = sbr.rel (0) target = $region25
    $region24: #{tpu_custom_call.1} parent=1 // pred_region
      _
    $region25: #{tpu_custom_call.1} parent=1 // pred_fallthru
      _
    // Predicated region
    $region26: #{tpu_custom_call.1} parent=1 // pred_check
      _
    $region27: #{tpu_custom_call.1} parent=1 // pred_check_branch
      %54 = sbr.rel (0) target = $region29
    $region28: #{tpu_custom_call.1} parent=1 // pred_region
      _
    $region29: #{tpu_custom_call.1} parent=1 // pred_fallthru
      _
    // Predicated region
    $region30: #{tpu_custom_call.1} parent=1 // pred_check
      _
    $region31: #{tpu_custom_call.1} parent=1 // pred_check_branch
      %56 = sbr.rel (0) target = $region33
    $region32: #{tpu_custom_call.1} parent=1 // pred_region
      _
    $region33: #{tpu_custom_call.1} parent=1 // pred_fallthru
      _
    // Predicated region
    $region34: #{tpu_custom_call.1} parent=1 // pred_check
      _
    $region35: #{tpu_custom_call.1} parent=1 // pred_check_branch
      %58 = sbr.rel (0) target = $region37
    $region36: #{tpu_custom_call.1} parent=1 // pred_region
      _
    $region37: #{tpu_custom_call.1} parent=1 // pred_fallthru
      _
    // Predicated region
    $region38: #{tpu_custom_call.1} parent=1 // pred_check
      _
    $region39: #{tpu_custom_call.1} parent=1 // pred_check_branch
      %60 = sbr.rel (0) target = $region41
    $region40: #{tpu_custom_call.1} parent=1 // pred_region
      _
    $region41: #{tpu_custom_call.1} parent=1 // pred_fallthru
      _
    // Predicated region
    $region42: #{tpu_custom_call.1} parent=1 // pred_check
      _
    $region43: #{tpu_custom_call.1} parent=1 // pred_check_branch
      %62 = sbr.rel (0) target = $region45
    $region44: #{tpu_custom_call.1} parent=1 // pred_region
      %64 = dma.done [#allocation5], 1024
    $region45: #{tpu_custom_call.1} parent=1 // pred_fallthru
      _
    // Predicated region
    $region46: #{tpu_custom_call.1} parent=1 // pred_check
      _
    $region47: #{tpu_custom_call.1} parent=1 // pred_check_branch
      %66 = sbr.rel (0) target = $region49
    $region48: #{tpu_custom_call.1} parent=1 // pred_region
      %68 = dma.done [#allocation7], 4096
    $region49: #{tpu_custom_call.1} parent=1 // pred_fallthru
      _
    %v69 = vld [vmem:[%s0] sm:$0xff]
    %v70 = vld [vmem:[%s0 + $0x8] sm:$0xff]
    %v71 = vld [vmem:[%s0 + $0x10] sm:$0xff]
    %v72 = vld [vmem:[%s0 + $0x18] sm:$0xff]
    %v73 = vld [vmem:[%s0 + $0x20] sm:$0xff]
    %v74 = vld [vmem:[%s0 + $0x28] sm:$0xff]
    %v75 = vld [vmem:[%s0 + $0x30] sm:$0xff]
    %v76 = vld [vmem:[%s0 + $0x38] sm:$0xff]
    %v77 = vld [vmem:[#allocation4] sm:$0xff]
    %v78 = vld [vmem:[#allocation4 + $0x8] sm:$0xff]
    %v79 = vld [vmem:[#allocation4 + $0x10] sm:$0xff]
    %v80 = vld [vmem:[#allocation4 + $0x18] sm:$0xff]
    %v81 = vld [vmem:[#allocation4 + $0x20] sm:$0xff]
    %v82 = vld [vmem:[#allocation4 + $0x28] sm:$0xff]
    %v83 = vld [vmem:[#allocation4 + $0x30] sm:$0x7f]
    %v84 = vld [vmem:[#allocation4 + $0x38] sm:$0x7f]
    %v85 = vld [vmem:[%s2] sm:$0x3]
    %v87 = vperm.slane %v85, 0
    %v88 = vperm.slane %v85, 1
    %vm91 = vcmask 252928
    %v93 = vsel %vm91, %v69, 0
    %v96 = vsel %vm91, %v70, 0
    %v99 = vsel %vm91, %v71, 0
    %v102 = vsel %vm91, %v72, 0
    %v105 = vsel %vm91, %v73, 0
    %v108 = vsel %vm91, %v74, 0
    %v111 = vsel %vm91, %v75, 0
    %v114 = vsel %vm91, %v76, 0
    %vm116 = vcmask 1046528
    %v118 = vsel %vm116, %v83, 0
    %v121 = vsel %vm116, %v84, 0
    %123 = vmatpush.msra.mxu0 0.0
    %124 = vmatpush.msra.mxu0 0.0
    %125 = vmatpush.msra.mxu0 0.0
    %126 = vmatpush.msra.mxu0 0.0
    %127 = vmatpush.msra.mxu0 0.0
    %128 = vmatpush.msra.mxu0 0.0
    %129 = vmatpush.msra.mxu0 0.0
    %130 = vmatpush.msra.mxu0 0.0
    %131 = vmatpush.msra.mxu0 0.0
    %132 = vmatpush.msra.mxu0 0.0
    %133 = vmatpush.msra.mxu0 0.0
    %134 = vmatpush.msra.mxu0 0.0
    %135 = vmatpush.msra.mxu0 %v118
    %136 = vmatpush.msra.mxu0 %v81
    %137 = vmatpush.msra.mxu0 %v79
    %138 = vmatpush.msra.mxu0 %v77
    %139 = vmatmul.f32.gmra.mxu0 %v93
    %v140 = vpop.f32.mrf.mxu0
    %v141 = vadd.f32 %v87, %v140
    %142 = vmatmul.f32.gmra.mxu0 %v96
    %v143 = vpop.f32.mrf.mxu0
    %v144 = vadd.f32 %v87, %v143
    %145 = vmatmul.f32.gmra.mxu0 %v99
    %v146 = vpop.f32.mrf.mxu0
    %v147 = vadd.f32 %v87, %v146
    %148 = vmatmul.f32.gmra.mxu0 %v102
    %v149 = vpop.f32.mrf.mxu0
    %v150 = vadd.f32 %v87, %v149
    %151 = vmatmul.f32.gmra.mxu0 %v105
    %v152 = vpop.f32.mrf.mxu0
    %v153 = vadd.f32 %v87, %v152
    %154 = vmatmul.f32.gmra.mxu0 %v108
    %v155 = vpop.f32.mrf.mxu0
    %v156 = vadd.f32 %v87, %v155
    %157 = vmatmul.f32.gmra.mxu0 %v111
    %v158 = vpop.f32.mrf.mxu0
    %v159 = vadd.f32 %v87, %v158
    %160 = vmatmul.f32.gmra.mxu0 %v114
    %v161 = vpop.f32.mrf.mxu0
    %v162 = vadd.f32 %v87, %v161
    %163 = vdwg.mxu0
    %164 = vmatpush.msra.mxu0 0.0
    %165 = vmatpush.msra.mxu0 0.0
    %166 = vmatpush.msra.mxu0 0.0
    %167 = vmatpush.msra.mxu0 0.0
    %168 = vmatpush.msra.mxu0 0.0
    %169 = vmatpush.msra.mxu0 0.0
    %170 = vmatpush.msra.mxu0 0.0
    %171 = vmatpush.msra.mxu0 0.0
    %172 = vmatpush.msra.mxu0 0.0
    %173 = vmatpush.msra.mxu0 0.0
    %174 = vmatpush.msra.mxu0 0.0
    %175 = vmatpush.msra.mxu0 0.0
    %176 = vmatpush.msra.mxu0 %v121
    %177 = vmatpush.msra.mxu0 %v82
    %178 = vmatpush.msra.mxu0 %v80
    %179 = vmatpush.msra.mxu0 %v78
    %180 = vmatmul.f32.gmra.mxu0 %v93
    %v181 = vpop.f32.mrf.mxu0
    %v182 = vadd.f32 %v88, %v181
    %183 = vmatmul.f32.gmra.mxu0 %v96
    %v184 = vpop.f32.mrf.mxu0
    %v185 = vadd.f32 %v88, %v184
    %186 = vmatmul.f32.gmra.mxu0 %v99
    %v187 = vpop.f32.mrf.mxu0
    %v188 = vadd.f32 %v88, %v187
    %189 = vmatmul.f32.gmra.mxu0 %v102
    %v190 = vpop.f32.mrf.mxu0
    %v191 = vadd.f32 %v88, %v190
    %192 = vmatmul.f32.gmra.mxu0 %v105
    %v193 = vpop.f32.mrf.mxu0
    %v194 = vadd.f32 %v88, %v193
    %195 = vmatmul.f32.gmra.mxu0 %v108
    %v196 = vpop.f32.mrf.mxu0
    %v197 = vadd.f32 %v88, %v196
    %198 = vmatmul.f32.gmra.mxu0 %v111
    %v199 = vpop.f32.mrf.mxu0
    %v200 = vadd.f32 %v88, %v199
    %201 = vmatmul.f32.gmra.mxu0 %v114
    %v202 = vpop.f32.mrf.mxu0
    %v203 = vadd.f32 %v88, %v202
    %204 = vdwg.mxu0
    %205 = vst [vmem:[#allocation2] sm:$0xff] %v141
    %206 = vst [vmem:[#allocation2 + $0x8] sm:$0xff] %v182
    %207 = vst [vmem:[#allocation2 + $0x10] sm:$0xff] %v144
    %208 = vst [vmem:[#allocation2 + $0x18] sm:$0xff] %v185
    %209 = vst [vmem:[#allocation2 + $0x20] sm:$0xff] %v147
    %210 = vst [vmem:[#allocation2 + $0x28] sm:$0xff] %v188
    %211 = vst [vmem:[#allocation2 + $0x30] sm:$0xff] %v150
    %212 = vst [vmem:[#allocation2 + $0x38] sm:$0xff] %v191
    %213 = vst [vmem:[#allocation2 + $0x40] sm:$0xff] %v153
    %214 = vst [vmem:[#allocation2 + $0x48] sm:$0xff] %v194
    %215 = vst [vmem:[#allocation2 + $0x50] sm:$0xff] %v156
    %216 = vst [vmem:[#allocation2 + $0x58] sm:$0xff] %v197
    %217 = vst [vmem:[#allocation2 + $0x60] sm:$0xff] %v159
    %218 = vst [vmem:[#allocation2 + $0x68] sm:$0xff] %v200
    %219 = vst [vmem:[#allocation2 + $0x70] sm:$0xff] %v162
    %220 = vst [vmem:[#allocation2 + $0x78] sm:$0xff] %v203
    %v221 = vld [vmem:[%s5] sm:$0x3]
    %v223 = vperm.slane %v221, 0
    %v224 = vperm.slane %v221, 1
    %v227 = vld [vmem:[%s3] sm:$0xff]
    %v228 = vld [vmem:[%s3 + $0x8] sm:$0xff]
    %v229 = vld [vmem:[%s3 + $0x10] sm:$0xff]
    %v230 = vld [vmem:[%s3 + $0x18] sm:$0xff]
    %v231 = vld [vmem:[%s3 + $0x20] sm:$0xff]
    %v232 = vld [vmem:[%s3 + $0x28] sm:$0xff]
    %v233 = vld [vmem:[%s3 + $0x30] sm:$0xff]
    %v234 = vld [vmem:[%s3 + $0x38] sm:$0xff]
    %v235 = vld [vmem:[%s3 + $0x40] sm:$0xff]
    %v236 = vld [vmem:[%s3 + $0x48] sm:$0xff]
    %v237 = vld [vmem:[%s3 + $0x50] sm:$0xff]
    %v238 = vld [vmem:[%s3 + $0x58] sm:$0xff]
    %v239 = vld [vmem:[%s3 + $0x60] sm:$0xff]
    %v240 = vld [vmem:[%s3 + $0x68] sm:$0xff]
    %v241 = vld [vmem:[%s3 + $0x70] sm:$0xff]
    %v242 = vld [vmem:[%s3 + $0x78] sm:$0xff]
    %s243 = smul.u32 0, 2
    %s244 = smul.addr %s243, 8
    %s245 = scalar_lea.vmem [#allocation2], %s244
    %v246 = vld [vmem:[%s245] sm:$0xff]
    %v247 = vld [vmem:[%s245 + $0x8] sm:$0xff]
    %vm248 = vcmask 523264
    %v250 = vsel %vm248, 0.0, 0
    %252 = vmatpush.msra.mxu0 0.0
    %253 = vmatpush.msra.mxu0 0.0
    %254 = vmatpush.msra.mxu0 0.0
    %255 = vmatpush.msra.mxu0 0.0
    %256 = vmatpush.msra.mxu0 0.0
    %257 = vmatpush.msra.mxu0 0.0
    %258 = vmatpush.msra.mxu0 0.0
    %259 = vmatpush.msra.mxu0 0.0
    %260 = vmatpush.msra.mxu0 %v241
    %261 = vmatpush.msra.mxu0 %v239
    %262 = vmatpush.msra.mxu0 %v237
    %263 = vmatpush.msra.mxu0 %v235
    %264 = vmatpush.msra.mxu0 %v233
    %265 = vmatpush.msra.mxu0 %v231
    %266 = vmatpush.msra.mxu0 %v229
    %267 = vmatpush.msra.mxu0 %v227
    %268 = vmatmul.f32.gmra.mxu0 %v250
    %v269 = vpop.f32.mrf.mxu0
    %v270 = vadd.f32 %v246, %v269
    %271 = vdwg.mxu0
    %272 = vmatpush.msra.mxu0 0.0
    %273 = vmatpush.msra.mxu0 0.0
    %274 = vmatpush.msra.mxu0 0.0
    %275 = vmatpush.msra.mxu0 0.0
    %276 = vmatpush.msra.mxu0 0.0
    %277 = vmatpush.msra.mxu0 0.0
    %278 = vmatpush.msra.mxu0 0.0
    %279 = vmatpush.msra.mxu0 0.0
    %280 = vmatpush.msra.mxu0 %v242
    %281 = vmatpush.msra.mxu0 %v240
    %282 = vmatpush.msra.mxu0 %v238
    %283 = vmatpush.msra.mxu0 %v236
    %284 = vmatpush.msra.mxu0 %v234
    %285 = vmatpush.msra.mxu0 %v232
    %286 = vmatpush.msra.mxu0 %v230
    %287 = vmatpush.msra.mxu0 %v228
    %288 = vmatmul.f32.gmra.mxu0 %v250
    %v289 = vpop.f32.mrf.mxu0
    %v290 = vadd.f32 %v247, %v289
    %291 = vdwg.mxu0
    %v292 = vxor.u32 %v270, 2147483648
    %v293 = vxor.u32 %v290, 2147483648
    %v294 = vmul.f32 %v292, 1.442695
    %v295 = vpow.pop %v294
    %v296 = vmul.f32 %v293, 1.442695
    %v297 = vpow.pop %v296
    %v298 = vadd.f32 %v295, 1.0
    %v299 = vadd.f32 %v297, 1.0
    %v300 = vrcp.pop %v298
    %v301 = vmul.f32 %v298, %v300
    %v302 = vsub.f32 1.0, %v301
    %v303 = vmul.f32 %v300, %v302
    %v304 = vadd.f32 %v300, %v303
    %vm305 = vweird.f32 %v298
    %vm306 = vweird.f32 %v300
    %vm307 = vmor %vm305, %vm306
    %v308 = vsel %vm307, %v300, %v304
    %v309 = vand.u32 2147483647, %v298
    %vm310 = vcmp.eq.f32.partialorder %v309, 8.507059e+37
    %v311 = vand.u32 %v298, 2147483648
    %v312 = vor.u32 1.1754944e-38, %v311
    %v313 = vsel %vm310, %v312, %v308
    %v314 = vmul.f32 1.0, %v313
    %v315 = vrcp.pop %v299
    %v316 = vmul.f32 %v299, %v315
    %v317 = vsub.f32 1.0, %v316
    %v318 = vmul.f32 %v315, %v317
    %v319 = vadd.f32 %v315, %v318
    %vm320 = vweird.f32 %v299
    %vm321 = vweird.f32 %v315
    %vm322 = vmor %vm320, %vm321
    %v323 = vsel %vm322, %v315, %v319
    %v324 = vand.u32 2147483647, %v299
    %vm325 = vcmp.eq.f32.partialorder %v324, 8.507059e+37
    %v326 = vand.u32 %v299, 2147483648
    %v327 = vor.u32 1.1754944e-38, %v326
    %v328 = vsel %vm325, %v327, %v323
    %v329 = vmul.f32 1.0, %v328
    %v330 = vtanh.pop %v290
    %v331 = vmul.f32 %v314, 0.0
    %333 = vrot.lane.b32.xlu0 %v330, 64
    %v334 = vpop.permute.xlu0 %333
    %v336 = vmul.f32 %v314, %v334
    %338 = vrot.lane.b32.xlu0 %v336, 64
    %v339 = vpop.permute.xlu0 %338
    %v341 = vadd.f32 %v331, %v339
    %v342 = vtanh.pop %v341
    %344 = vrot.lane.b32.xlu0 %v342, 64
    %v345 = vpop.permute.xlu0 %344
    %v347 = vmul.f32 %v329, %v345
    %v348 = vsel %vm248, %v347, 0.0
    %v349 = vld [vmem:[#allocation6] sm:$0xff]
    %v350 = vld [vmem:[#allocation6 + $0x8] sm:$0xff]
    %v351 = vld [vmem:[#allocation6 + $0x10] sm:$0xff]
    %v352 = vld [vmem:[#allocation6 + $0x18] sm:$0xff]
    %v353 = vld [vmem:[#allocation6 + $0x20] sm:$0xff]
    %v354 = vld [vmem:[#allocation6 + $0x28] sm:$0xff]
    %v355 = vld [vmem:[#allocation6 + $0x30] sm:$0xff]
    %v356 = vld [vmem:[#allocation6 + $0x38] sm:$0xff]
    %v357 = vld [vmem:[#allocation6 + $0x40] sm:$0xff]
    %v358 = vld [vmem:[#allocation6 + $0x48] sm:$0xff]
    %v359 = vld [vmem:[#allocation6 + $0x50] sm:$0xff]
    %v360 = vld [vmem:[#allocation6 + $0x58] sm:$0xff]
    %v361 = vld [vmem:[#allocation6 + $0x60] sm:$0xff]
    %v362 = vld [vmem:[#allocation6 + $0x68] sm:$0xff]
    %v363 = vld [vmem:[#allocation6 + $0x70] sm:$0xff]
    %v364 = vld [vmem:[#allocation6 + $0x78] sm:$0xff]
    %v365 = vld [vmem:[#allocation6 + $0x80] sm:$0xff]
    %v366 = vld [vmem:[#allocation6 + $0x88] sm:$0xff]
    %v367 = vld [vmem:[#allocation6 + $0x90] sm:$0xff]
    %v368 = vld [vmem:[#allocation6 + $0x98] sm:$0xff]
    %v369 = vld [vmem:[#allocation6 + $0xa0] sm:$0xff]
    %v370 = vld [vmem:[#allocation6 + $0xa8] sm:$0xff]
    %v371 = vld [vmem:[#allocation6 + $0xb0] sm:$0xff]
    %v372 = vld [vmem:[#allocation6 + $0xb8] sm:$0xff]
    %v373 = vld [vmem:[#allocation6 + $0xc0] sm:$0xff]
    %v374 = vld [vmem:[#allocation6 + $0xc8] sm:$0xff]
    %v375 = vld [vmem:[#allocation6 + $0xd0] sm:$0xff]
    %v376 = vld [vmem:[#allocation6 + $0xd8] sm:$0xff]
    %v377 = vld [vmem:[#allocation6 + $0xe0] sm:$0xff]
    %v378 = vld [vmem:[#allocation6 + $0xe8] sm:$0xff]
    %v379 = vld [vmem:[#allocation6 + $0xf0] sm:$0xff]
    %v380 = vld [vmem:[#allocation6 + $0xf8] sm:$0xff]
    %381 = vmatpush.msra.mxu0 %v379
    %382 = vmatpush.msra.mxu0 %v377
    %383 = vmatpush.msra.mxu0 %v375
    %384 = vmatpush.msra.mxu0 %v373
    %385 = vmatpush.msra.mxu0 %v371
    %386 = vmatpush.msra.mxu0 %v369
    %387 = vmatpush.msra.mxu0 %v367
    %388 = vmatpush.msra.mxu0 %v365
    %389 = vmatpush.msra.mxu0 %v363
    %390 = vmatpush.msra.mxu0 %v361
    %391 = vmatpush.msra.mxu0 %v359
    %392 = vmatpush.msra.mxu0 %v357
    %393 = vmatpush.msra.mxu0 %v355
    %394 = vmatpush.msra.mxu0 %v353
    %395 = vmatpush.msra.mxu0 %v351
    %396 = vmatpush.msra.mxu0 %v349
    %397 = vmatmul.f32.gmra.mxu0 %v348
    %v398 = vpop.f32.mrf.mxu0
    %v399 = vadd.f32 %v223, %v398
    %400 = vdwg.mxu0
    %401 = vmatpush.msra.mxu0 %v380
    %402 = vmatpush.msra.mxu0 %v378
    %403 = vmatpush.msra.mxu0 %v376
    %404 = vmatpush.msra.mxu0 %v374
    %405 = vmatpush.msra.mxu0 %v372
    %406 = vmatpush.msra.mxu0 %v370
    %407 = vmatpush.msra.mxu0 %v368
    %408 = vmatpush.msra.mxu0 %v366
    %409 = vmatpush.msra.mxu0 %v364
    %410 = vmatpush.msra.mxu0 %v362
    %411 = vmatpush.msra.mxu0 %v360
    %412 = vmatpush.msra.mxu0 %v358
    %413 = vmatpush.msra.mxu0 %v356
    %414 = vmatpush.msra.mxu0 %v354
    %415 = vmatpush.msra.mxu0 %v352
    %416 = vmatpush.msra.mxu0 %v350
    %417 = vmatmul.f32.gmra.mxu0 %v348
    %v418 = vpop.f32.mrf.mxu0
    %v419 = vadd.f32 %v224, %v418
    %420 = vdwg.mxu0
    %v421 = vxor.u32 %v399, 2147483648
    %v422 = vxor.u32 %v419, 2147483648
    %v423 = vmul.f32 %v421, 1.442695
    %v424 = vpow.pop %v423
    %v425 = vmul.f32 %v422, 1.442695
    %v426 = vpow.pop %v425
    %v427 = vadd.f32 %v424, 1.0
    %v428 = vadd.f32 %v426, 1.0
    %v429 = vrcp.pop %v427
    %v430 = vmul.f32 %v427, %v429
    %v431 = vsub.f32 1.0, %v430
    %v432 = vmul.f32 %v429, %v431
    %v433 = vadd.f32 %v429, %v432
    %vm434 = vweird.f32 %v427
    %vm435 = vweird.f32 %v429
    %vm436 = vmor %vm434, %vm435
    %v437 = vsel %vm436, %v429, %v433
    %v438 = vand.u32 2147483647, %v427
    %vm439 = vcmp.eq.f32.partialorder %v438, 8.507059e+37
    %v440 = vand.u32 %v427, 2147483648
    %v441 = vor.u32 1.1754944e-38, %v440
    %v442 = vsel %vm439, %v441, %v437
    %v443 = vmul.f32 1.0, %v442
    %v444 = vrcp.pop %v428
    %v445 = vmul.f32 %v428, %v444
    %v446 = vsub.f32 1.0, %v445
    %v447 = vmul.f32 %v444, %v446
    %v448 = vadd.f32 %v444, %v447
    %vm449 = vweird.f32 %v428
    %vm450 = vweird.f32 %v444
    %vm451 = vmor %vm449, %vm450
    %v452 = vsel %vm451, %v444, %v448
    %v453 = vand.u32 2147483647, %v428
    %vm454 = vcmp.eq.f32.partialorder %v453, 8.507059e+37
    %v455 = vand.u32 %v428, 2147483648
    %v456 = vor.u32 1.1754944e-38, %v455
    %v457 = vsel %vm454, %v456, %v452
    %v458 = vmul.f32 1.0, %v457
    %v459 = vtanh.pop %v419
    %v460 = vmul.f32 %v443, 0.0
    %462 = vrot.lane.b32.xlu0 %v459, 64
    %v463 = vpop.permute.xlu0 %462
    %v465 = vmul.f32 %v443, %v463
    %467 = vrot.lane.b32.xlu0 %v465, 64
    %v468 = vpop.permute.xlu0 %467
    %v470 = vadd.f32 %v460, %v468
    %v471 = vtanh.pop %v470
    %473 = vrot.lane.b32.xlu0 %v471, 64
    %v474 = vpop.permute.xlu0 %473
    %v476 = vmul.f32 %v458, %v474
    %s477 = smul.u32 1, 2
    %s478 = smul.addr %s477, 8
    %s479 = scalar_lea.vmem [#allocation2], %s478
    %v480 = vld [vmem:[%s479] sm:$0xff]
    %v481 = vld [vmem:[%s479 + $0x8] sm:$0xff]
    %v483 = vsel %vm248, %v347, 0
    %485 = vmatpush.msra.mxu0 0.0
    %486 = vmatpush.msra.mxu0 0.0
    %487 = vmatpush.msra.mxu0 0.0
    %488 = vmatpush.msra.mxu0 0.0
    %489 = vmatpush.msra.mxu0 0.0
    %490 = vmatpush.msra.mxu0 0.0
    %491 = vmatpush.msra.mxu0 0.0
    %492 = vmatpush.msra.mxu0 0.0
    %493 = vmatpush.msra.mxu0 %v241
    %494 = vmatpush.msra.mxu0 %v239
    %495 = vmatpush.msra.mxu0 %v237
    %496 = vmatpush.msra.mxu0 %v235
    %497 = vmatpush.msra.mxu0 %v233
    %498 = vmatpush.msra.mxu0 %v231
    %499 = vmatpush.msra.mxu0 %v229
    %500 = vmatpush.msra.mxu0 %v227
    %501 = vmatmul.f32.gmra.mxu0 %v483
    %v502 = vpop.f32.mrf.mxu0
    %v503 = vadd.f32 %v480, %v502
    %504 = vdwg.mxu0
    %505 = vmatpush.msra.mxu0 0.0
    %506 = vmatpush.msra.mxu0 0.0
    %507 = vmatpush.msra.mxu0 0.0
    %508 = vmatpush.msra.mxu0 0.0
    %509 = vmatpush.msra.mxu0 0.0
    %510 = vmatpush.msra.mxu0 0.0
    %511 = vmatpush.msra.mxu0 0.0
    %512 = vmatpush.msra.mxu0 0.0
    %513 = vmatpush.msra.mxu0 %v242
    %514 = vmatpush.msra.mxu0 %v240
    %515 = vmatpush.msra.mxu0 %v238
    %516 = vmatpush.msra.mxu0 %v236
    %517 = vmatpush.msra.mxu0 %v234
    %518 = vmatpush.msra.mxu0 %v232
    %519 = vmatpush.msra.mxu0 %v230
    %520 = vmatpush.msra.mxu0 %v228
    %521 = vmatmul.f32.gmra.mxu0 %v483
    %v522 = vpop.f32.mrf.mxu0
    %v523 = vadd.f32 %v481, %v522
    %524 = vdwg.mxu0
    %v525 = vxor.u32 %v503, 2147483648
    %v526 = vxor.u32 %v523, 2147483648
    %v527 = vmul.f32 %v525, 1.442695
    %v528 = vpow.pop %v527
    %v529 = vmul.f32 %v526, 1.442695
    %v530 = vpow.pop %v529
    %v531 = vadd.f32 %v528, 1.0
    %v532 = vadd.f32 %v530, 1.0
    %v533 = vrcp.pop %v531
    %v534 = vmul.f32 %v531, %v533
    %v535 = vsub.f32 1.0, %v534
    %v536 = vmul.f32 %v533, %v535
    %v537 = vadd.f32 %v533, %v536
    %vm538 = vweird.f32 %v531
    %vm539 = vweird.f32 %v533
    %vm540 = vmor %vm538, %vm539
    %v541 = vsel %vm540, %v533, %v537
    %v542 = vand.u32 2147483647, %v531
    %vm543 = vcmp.eq.f32.partialorder %v542, 8.507059e+37
    %v544 = vand.u32 %v531, 2147483648
    %v545 = vor.u32 1.1754944e-38, %v544
    %v546 = vsel %vm543, %v545, %v541
    %v547 = vmul.f32 1.0, %v546
    %v548 = vrcp.pop %v532
    %v549 = vmul.f32 %v532, %v548
    %v550 = vsub.f32 1.0, %v549
    %v551 = vmul.f32 %v548, %v550
    %v552 = vadd.f32 %v548, %v551
    %vm553 = vweird.f32 %v532
    %vm554 = vweird.f32 %v548
    %vm555 = vmor %vm553, %vm554
    %v556 = vsel %vm555, %v548, %v552
    %v557 = vand.u32 2147483647, %v532
    %vm558 = vcmp.eq.f32.partialorder %v557, 8.507059e+37
    %v559 = vand.u32 %v532, 2147483648
    %v560 = vor.u32 1.1754944e-38, %v559
    %v561 = vsel %vm558, %v560, %v556
    %v562 = vmul.f32 1.0, %v561
    %v563 = vtanh.pop %v523
    %v564 = vmul.f32 %v547, %v341
    %566 = vrot.lane.b32.xlu0 %v563, 64
    %v567 = vpop.permute.xlu0 %566
    %v569 = vmul.f32 %v547, %v567
    %571 = vrot.lane.b32.xlu0 %v569, 64
    %v572 = vpop.permute.xlu0 %571
    %v574 = vadd.f32 %v564, %v572
    %v575 = vtanh.pop %v574
    %577 = vrot.lane.b32.xlu0 %v575, 64
    %v578 = vpop.permute.xlu0 %577
    %v580 = vmul.f32 %v562, %v578
    %582 = vrot.lane.b32.xlu0 %v476, 64
    %v583 = vpop.permute.xlu0 %582
    %v585 = vsel %vm248, %v580, %v583
    %586 = vmatpush.msra.mxu0 %v379
    %587 = vmatpush.msra.mxu0 %v377
    %588 = vmatpush.msra.mxu0 %v375
    %589 = vmatpush.msra.mxu0 %v373
    %590 = vmatpush.msra.mxu0 %v371
    %591 = vmatpush.msra.mxu0 %v369
    %592 = vmatpush.msra.mxu0 %v367
    %593 = vmatpush.msra.mxu0 %v365
    %594 = vmatpush.msra.mxu0 %v363
    %595 = vmatpush.msra.mxu0 %v361
    %596 = vmatpush.msra.mxu0 %v359
    %597 = vmatpush.msra.mxu0 %v357
    %598 = vmatpush.msra.mxu0 %v355
    %599 = vmatpush.msra.mxu0 %v353
    %600 = vmatpush.msra.mxu0 %v351
    %601 = vmatpush.msra.mxu0 %v349
    %602 = vmatmul.f32.gmra.mxu0 %v585
    %v603 = vpop.f32.mrf.mxu0
    %v604 = vadd.f32 %v223, %v603
    %605 = vdwg.mxu0
    %606 = vmatpush.msra.mxu0 %v380
    %607 = vmatpush.msra.mxu0 %v378
    %608 = vmatpush.msra.mxu0 %v376
    %609 = vmatpush.msra.mxu0 %v374
    %610 = vmatpush.msra.mxu0 %v372
    %611 = vmatpush.msra.mxu0 %v370
    %612 = vmatpush.msra.mxu0 %v368
    %613 = vmatpush.msra.mxu0 %v366
    %614 = vmatpush.msra.mxu0 %v364
    %615 = vmatpush.msra.mxu0 %v362
    %616 = vmatpush.msra.mxu0 %v360
    %617 = vmatpush.msra.mxu0 %v358
    %618 = vmatpush.msra.mxu0 %v356
    %619 = vmatpush.msra.mxu0 %v354
    %620 = vmatpush.msra.mxu0 %v352
    %621 = vmatpush.msra.mxu0 %v350
    %622 = vmatmul.f32.gmra.mxu0 %v585
    %v623 = vpop.f32.mrf.mxu0
    %v624 = vadd.f32 %v224, %v623
    %625 = vdwg.mxu0
    %v626 = vxor.u32 %v604, 2147483648
    %v627 = vxor.u32 %v624, 2147483648
    %v628 = vmul.f32 %v626, 1.442695
    %v629 = vpow.pop %v628
    %v630 = vmul.f32 %v627, 1.442695
    %v631 = vpow.pop %v630
    %v632 = vadd.f32 %v629, 1.0
    %v633 = vadd.f32 %v631, 1.0
    %v634 = vrcp.pop %v632
    %v635 = vmul.f32 %v632, %v634
    %v636 = vsub.f32 1.0, %v635
    %v637 = vmul.f32 %v634, %v636
    %v638 = vadd.f32 %v634, %v637
    %vm639 = vweird.f32 %v632
    %vm640 = vweird.f32 %v634
    %vm641 = vmor %vm639, %vm640
    %v642 = vsel %vm641, %v634, %v638
    %v643 = vand.u32 2147483647, %v632
    %vm644 = vcmp.eq.f32.partialorder %v643, 8.507059e+37
    %v645 = vand.u32 %v632, 2147483648
    %v646 = vor.u32 1.1754944e-38, %v645
    %v647 = vsel %vm644, %v646, %v642
    %v648 = vmul.f32 1.0, %v647
    %v649 = vrcp.pop %v633
    %v650 = vmul.f32 %v633, %v649
    %v651 = vsub.f32 1.0, %v650
    %v652 = vmul.f32 %v649, %v651
    %v653 = vadd.f32 %v649, %v652
    %vm654 = vweird.f32 %v633
    %vm655 = vweird.f32 %v649
    %vm656 = vmor %vm654, %vm655
    %v657 = vsel %vm656, %v649, %v653
    %v658 = vand.u32 2147483647, %v633
    %vm659 = vcmp.eq.f32.partialorder %v658, 8.507059e+37
    %v660 = vand.u32 %v633, 2147483648
    %v661 = vor.u32 1.1754944e-38, %v660
    %v662 = vsel %vm659, %v661, %v657
    %v663 = vmul.f32 1.0, %v662
    %v664 = vtanh.pop %v624
    %v665 = vmul.f32 %v648, %v470
    %667 = vrot.lane.b32.xlu0 %v664, 64
    %v668 = vpop.permute.xlu0 %667
    %v670 = vmul.f32 %v648, %v668
    %672 = vrot.lane.b32.xlu0 %v670, 64
    %v673 = vpop.permute.xlu0 %672
    %v675 = vadd.f32 %v665, %v673
    %v676 = vtanh.pop %v675
    %678 = vrot.lane.b32.xlu0 %v676, 64
    %v679 = vpop.permute.xlu0 %678
    %v681 = vmul.f32 %v663, %v679
    %s682 = smul.u32 2, 2
    %s683 = smul.addr %s682, 8
    %s684 = scalar_lea.vmem [#allocation2], %s683
    %v685 = vld [vmem:[%s684] sm:$0xff]
    %v686 = vld [vmem:[%s684 + $0x8] sm:$0xff]
    %v688 = vsel %vm248, %v580, 0
    %690 = vmatpush.msra.mxu0 0.0
    %691 = vmatpush.msra.mxu0 0.0
    %692 = vmatpush.msra.mxu0 0.0
    %693 = vmatpush.msra.mxu0 0.0
    %694 = vmatpush.msra.mxu0 0.0
    %695 = vmatpush.msra.mxu0 0.0
    %696 = vmatpush.msra.mxu0 0.0
    %697 = vmatpush.msra.mxu0 0.0
    %698 = vmatpush.msra.mxu0 %v241
    %699 = vmatpush.msra.mxu0 %v239
    %700 = vmatpush.msra.mxu0 %v237
    %701 = vmatpush.msra.mxu0 %v235
    %702 = vmatpush.msra.mxu0 %v233
    %703 = vmatpush.msra.mxu0 %v231
    %704 = vmatpush.msra.mxu0 %v229
    %705 = vmatpush.msra.mxu0 %v227
    %706 = vmatmul.f32.gmra.mxu0 %v688
    %v707 = vpop.f32.mrf.mxu0
    %v708 = vadd.f32 %v685, %v707
    %709 = vdwg.mxu0
    %710 = vmatpush.msra.mxu0 0.0
    %711 = vmatpush.msra.mxu0 0.0
    %712 = vmatpush.msra.mxu0 0.0
    %713 = vmatpush.msra.mxu0 0.0
    %714 = vmatpush.msra.mxu0 0.0
    %715 = vmatpush.msra.mxu0 0.0
    %716 = vmatpush.msra.mxu0 0.0
    %717 = vmatpush.msra.mxu0 0.0
    %718 = vmatpush.msra.mxu0 %v242
    %719 = vmatpush.msra.mxu0 %v240
    %720 = vmatpush.msra.mxu0 %v238
    %721 = vmatpush.msra.mxu0 %v236
    %722 = vmatpush.msra.mxu0 %v234
    %723 = vmatpush.msra.mxu0 %v232
    %724 = vmatpush.msra.mxu0 %v230
    %725 = vmatpush.msra.mxu0 %v228
    %726 = vmatmul.f32.gmra.mxu0 %v688
    %v727 = vpop.f32.mrf.mxu0
    %v728 = vadd.f32 %v686, %v727
    %729 = vdwg.mxu0
    %v730 = vxor.u32 %v708, 2147483648
    %v731 = vxor.u32 %v728, 2147483648
    %v732 = vmul.f32 %v730, 1.442695
    %v733 = vpow.pop %v732
    %v734 = vmul.f32 %v731, 1.442695
    %v735 = vpow.pop %v734
    %v736 = vadd.f32 %v733, 1.0
    %v737 = vadd.f32 %v735, 1.0
    %v738 = vrcp.pop %v736
    %v739 = vmul.f32 %v736, %v738
    %v740 = vsub.f32 1.0, %v739
    %v741 = vmul.f32 %v738, %v740
    %v742 = vadd.f32 %v738, %v741
    %vm743 = vweird.f32 %v736
    %vm744 = vweird.f32 %v738
    %vm745 = vmor %vm743, %vm744
    %v746 = vsel %vm745, %v738, %v742
    %v747 = vand.u32 2147483647, %v736
    %vm748 = vcmp.eq.f32.partialorder %v747, 8.507059e+37
    %v749 = vand.u32 %v736, 2147483648
    %v750 = vor.u32 1.1754944e-38, %v749
    %v751 = vsel %vm748, %v750, %v746
    %v752 = vmul.f32 1.0, %v751
    %v753 = vrcp.pop %v737
    %v754 = vmul.f32 %v737, %v753
    %v755 = vsub.f32 1.0, %v754
    %v756 = vmul.f32 %v753, %v755
    %v757 = vadd.f32 %v753, %v756
    %vm758 = vweird.f32 %v737
    %vm759 = vweird.f32 %v753
    %vm760 = vmor %vm758, %vm759
    %v761 = vsel %vm760, %v753, %v757
    %v762 = vand.u32 2147483647, %v737
    %vm763 = vcmp.eq.f32.partialorder %v762, 8.507059e+37
    %v764 = vand.u32 %v737, 2147483648
    %v765 = vor.u32 1.1754944e-38, %v764
    %v766 = vsel %vm763, %v765, %v761
    %v767 = vmul.f32 1.0, %v766
    %v768 = vtanh.pop %v728
    %v769 = vmul.f32 %v752, %v574
    %771 = vrot.lane.b32.xlu0 %v768, 64
    %v772 = vpop.permute.xlu0 %771
    %v774 = vmul.f32 %v752, %v772
    %776 = vrot.lane.b32.xlu0 %v774, 64
    %v777 = vpop.permute.xlu0 %776
    %v779 = vadd.f32 %v769, %v777
    %v780 = vtanh.pop %v779
    %782 = vrot.lane.b32.xlu0 %v780, 64
    %v783 = vpop.permute.xlu0 %782
    %v785 = vmul.f32 %v767, %v783
    %787 = vrot.lane.b32.xlu0 %v681, 64
    %v788 = vpop.permute.xlu0 %787
    %v790 = vsel %vm248, %v785, %v788
    %791 = vmatpush.msra.mxu0 %v379
    %792 = vmatpush.msra.mxu0 %v377
    %793 = vmatpush.msra.mxu0 %v375
    %794 = vmatpush.msra.mxu0 %v373
    %795 = vmatpush.msra.mxu0 %v371
    %796 = vmatpush.msra.mxu0 %v369
    %797 = vmatpush.msra.mxu0 %v367
    %798 = vmatpush.msra.mxu0 %v365
    %799 = vmatpush.msra.mxu0 %v363
    %800 = vmatpush.msra.mxu0 %v361
    %801 = vmatpush.msra.mxu0 %v359
    %802 = vmatpush.msra.mxu0 %v357
    %803 = vmatpush.msra.mxu0 %v355
    %804 = vmatpush.msra.mxu0 %v353
    %805 = vmatpush.msra.mxu0 %v351
    %806 = vmatpush.msra.mxu0 %v349
    %807 = vmatmul.f32.gmra.mxu0 %v790
    %v808 = vpop.f32.mrf.mxu0
    %v809 = vadd.f32 %v223, %v808
    %810 = vdwg.mxu0
    %811 = vmatpush.msra.mxu0 %v380
    %812 = vmatpush.msra.mxu0 %v378
    %813 = vmatpush.msra.mxu0 %v376
    %814 = vmatpush.msra.mxu0 %v374
    %815 = vmatpush.msra.mxu0 %v372
    %816 = vmatpush.msra.mxu0 %v370
    %817 = vmatpush.msra.mxu0 %v368
    %818 = vmatpush.msra.mxu0 %v366
    %819 = vmatpush.msra.mxu0 %v364
    %820 = vmatpush.msra.mxu0 %v362
    %821 = vmatpush.msra.mxu0 %v360
    %822 = vmatpush.msra.mxu0 %v358
    %823 = vmatpush.msra.mxu0 %v356
    %824 = vmatpush.msra.mxu0 %v354
    %825 = vmatpush.msra.mxu0 %v352
    %826 = vmatpush.msra.mxu0 %v350
    %827 = vmatmul.f32.gmra.mxu0 %v790
    %v828 = vpop.f32.mrf.mxu0
    %v829 = vadd.f32 %v224, %v828
    %830 = vdwg.mxu0
    %v831 = vxor.u32 %v809, 2147483648
    %v832 = vxor.u32 %v829, 2147483648
    %v833 = vmul.f32 %v831, 1.442695
    %v834 = vpow.pop %v833
    %v835 = vmul.f32 %v832, 1.442695
    %v836 = vpow.pop %v835
    %v837 = vadd.f32 %v834, 1.0
    %v838 = vadd.f32 %v836, 1.0
    %v839 = vrcp.pop %v837
    %v840 = vmul.f32 %v837, %v839
    %v841 = vsub.f32 1.0, %v840
    %v842 = vmul.f32 %v839, %v841
    %v843 = vadd.f32 %v839, %v842
    %vm844 = vweird.f32 %v837
    %vm845 = vweird.f32 %v839
    %vm846 = vmor %vm844, %vm845
    %v847 = vsel %vm846, %v839, %v843
    %v848 = vand.u32 2147483647, %v837
    %vm849 = vcmp.eq.f32.partialorder %v848, 8.507059e+37
    %v850 = vand.u32 %v837, 2147483648
    %v851 = vor.u32 1.1754944e-38, %v850
    %v852 = vsel %vm849, %v851, %v847
    %v853 = vmul.f32 1.0, %v852
    %v854 = vrcp.pop %v838
    %v855 = vmul.f32 %v838, %v854
    %v856 = vsub.f32 1.0, %v855
    %v857 = vmul.f32 %v854, %v856
    %v858 = vadd.f32 %v854, %v857
    %vm859 = vweird.f32 %v838
    %vm860 = vweird.f32 %v854
    %vm861 = vmor %vm859, %vm860
    %v862 = vsel %vm861, %v854, %v858
    %v863 = vand.u32 2147483647, %v838
    %vm864 = vcmp.eq.f32.partialorder %v863, 8.507059e+37
    %v865 = vand.u32 %v838, 2147483648
    %v866 = vor.u32 1.1754944e-38, %v865
    %v867 = vsel %vm864, %v866, %v862
    %v868 = vmul.f32 1.0, %v867
    %v869 = vtanh.pop %v829
    %v870 = vmul.f32 %v853, %v675
    %872 = vrot.lane.b32.xlu0 %v869, 64
    %v873 = vpop.permute.xlu0 %872
    %v875 = vmul.f32 %v853, %v873
    %877 = vrot.lane.b32.xlu0 %v875, 64
    %v878 = vpop.permute.xlu0 %877
    %v880 = vadd.f32 %v870, %v878
    %v881 = vtanh.pop %v880
    %883 = vrot.lane.b32.xlu0 %v881, 64
    %v884 = vpop.permute.xlu0 %883
    %v886 = vmul.f32 %v868, %v884
    %s887 = smul.u32 3, 2
    %s888 = smul.addr %s887, 8
    %s889 = scalar_lea.vmem [#allocation2], %s888
    %v890 = vld [vmem:[%s889] sm:$0xff]
    %v891 = vld [vmem:[%s889 + $0x8] sm:$0xff]
    %v893 = vsel %vm248, %v785, 0
    %895 = vmatpush.msra.mxu0 0.0
    %896 = vmatpush.msra.mxu0 0.0
    %897 = vmatpush.msra.mxu0 0.0
    %898 = vmatpush.msra.mxu0 0.0
    %899 = vmatpush.msra.mxu0 0.0
    %900 = vmatpush.msra.mxu0 0.0
    %901 = vmatpush.msra.mxu0 0.0
    %902 = vmatpush.msra.mxu0 0.0
    %903 = vmatpush.msra.mxu0 %v241
    %904 = vmatpush.msra.mxu0 %v239
    %905 = vmatpush.msra.mxu0 %v237
    %906 = vmatpush.msra.mxu0 %v235
    %907 = vmatpush.msra.mxu0 %v233
    %908 = vmatpush.msra.mxu0 %v231
    %909 = vmatpush.msra.mxu0 %v229
    %910 = vmatpush.msra.mxu0 %v227
    %911 = vmatmul.f32.gmra.mxu0 %v893
    %v912 = vpop.f32.mrf.mxu0
    %v913 = vadd.f32 %v890, %v912
    %914 = vdwg.mxu0
    %915 = vmatpush.msra.mxu0 0.0
    %916 = vmatpush.msra.mxu0 0.0
    %917 = vmatpush.msra.mxu0 0.0
    %918 = vmatpush.msra.mxu0 0.0
    %919 = vmatpush.msra.mxu0 0.0
    %920 = vmatpush.msra.mxu0 0.0
    %921 = vmatpush.msra.mxu0 0.0
    %922 = vmatpush.msra.mxu0 0.0
    %923 = vmatpush.msra.mxu0 %v242
    %924 = vmatpush.msra.mxu0 %v240
    %925 = vmatpush.msra.mxu0 %v238
    %926 = vmatpush.msra.mxu0 %v236
    %927 = vmatpush.msra.mxu0 %v234
    %928 = vmatpush.msra.mxu0 %v232
    %929 = vmatpush.msra.mxu0 %v230
    %930 = vmatpush.msra.mxu0 %v228
    %931 = vmatmul.f32.gmra.mxu0 %v893
    %v932 = vpop.f32.mrf.mxu0
    %v933 = vadd.f32 %v891, %v932
    %934 = vdwg.mxu0
    %v935 = vxor.u32 %v913, 2147483648
    %v936 = vxor.u32 %v933, 2147483648
    %v937 = vmul.f32 %v935, 1.442695
    %v938 = vpow.pop %v937
    %v939 = vmul.f32 %v936, 1.442695
    %v940 = vpow.pop %v939
    %v941 = vadd.f32 %v938, 1.0
    %v942 = vadd.f32 %v940, 1.0
    %v943 = vrcp.pop %v941
    %v944 = vmul.f32 %v941, %v943
    %v945 = vsub.f32 1.0, %v944
    %v946 = vmul.f32 %v943, %v945
    %v947 = vadd.f32 %v943, %v946
    %vm948 = vweird.f32 %v941
    %vm949 = vweird.f32 %v943
    %vm950 = vmor %vm948, %vm949
    %v951 = vsel %vm950, %v943, %v947
    %v952 = vand.u32 2147483647, %v941
    %vm953 = vcmp.eq.f32.partialorder %v952, 8.507059e+37
    %v954 = vand.u32 %v941, 2147483648
    %v955 = vor.u32 1.1754944e-38, %v954
    %v956 = vsel %vm953, %v955, %v951
    %v957 = vmul.f32 1.0, %v956
    %v958 = vrcp.pop %v942
    %v959 = vmul.f32 %v942, %v958
    %v960 = vsub.f32 1.0, %v959
    %v961 = vmul.f32 %v958, %v960
    %v962 = vadd.f32 %v958, %v961
    %vm963 = vweird.f32 %v942
    %vm964 = vweird.f32 %v958
    %vm965 = vmor %vm963, %vm964
    %v966 = vsel %vm965, %v958, %v962
    %v967 = vand.u32 2147483647, %v942
    %vm968 = vcmp.eq.f32.partialorder %v967, 8.507059e+37
    %v969 = vand.u32 %v942, 2147483648
    %v970 = vor.u32 1.1754944e-38, %v969
    %v971 = vsel %vm968, %v970, %v966
    %v972 = vmul.f32 1.0, %v971
    %v973 = vtanh.pop %v933
    %v974 = vmul.f32 %v957, %v779
    %976 = vrot.lane.b32.xlu0 %v973, 64
    %v977 = vpop.permute.xlu0 %976
    %v979 = vmul.f32 %v957, %v977
    %981 = vrot.lane.b32.xlu0 %v979, 64
    %v982 = vpop.permute.xlu0 %981
    %v984 = vadd.f32 %v974, %v982
    %v985 = vtanh.pop %v984
    %987 = vrot.lane.b32.xlu0 %v985, 64
    %v988 = vpop.permute.xlu0 %987
    %v990 = vmul.f32 %v972, %v988
    %992 = vrot.lane.b32.xlu0 %v886, 64
    %v993 = vpop.permute.xlu0 %992
    %v995 = vsel %vm248, %v990, %v993
    %996 = vmatpush.msra.mxu0 %v379
    %997 = vmatpush.msra.mxu0 %v377
    %998 = vmatpush.msra.mxu0 %v375
    %999 = vmatpush.msra.mxu0 %v373
    %1000 = vmatpush.msra.mxu0 %v371
    %1001 = vmatpush.msra.mxu0 %v369
    %1002 = vmatpush.msra.mxu0 %v367
    %1003 = vmatpush.msra.mxu0 %v365
    %1004 = vmatpush.msra.mxu0 %v363
    %1005 = vmatpush.msra.mxu0 %v361
    %1006 = vmatpush.msra.mxu0 %v359
    %1007 = vmatpush.msra.mxu0 %v357
    %1008 = vmatpush.msra.mxu0 %v355
    %1009 = vmatpush.msra.mxu0 %v353
    %1010 = vmatpush.msra.mxu0 %v351
    %1011 = vmatpush.msra.mxu0 %v349
    %1012 = vmatmul.f32.gmra.mxu0 %v995
    %v1013 = vpop.f32.mrf.mxu0
    %v1014 = vadd.f32 %v223, %v1013
    %1015 = vdwg.mxu0
    %1016 = vmatpush.msra.mxu0 %v380
    %1017 = vmatpush.msra.mxu0 %v378
    %1018 = vmatpush.msra.mxu0 %v376
    %1019 = vmatpush.msra.mxu0 %v374
    %1020 = vmatpush.msra.mxu0 %v372
    %1021 = vmatpush.msra.mxu0 %v370
    %1022 = vmatpush.msra.mxu0 %v368
    %1023 = vmatpush.msra.mxu0 %v366
    %1024 = vmatpush.msra.mxu0 %v364
    %1025 = vmatpush.msra.mxu0 %v362
    %1026 = vmatpush.msra.mxu0 %v360
    %1027 = vmatpush.msra.mxu0 %v358
    %1028 = vmatpush.msra.mxu0 %v356
    %1029 = vmatpush.msra.mxu0 %v354
    %1030 = vmatpush.msra.mxu0 %v352
    %1031 = vmatpush.msra.mxu0 %v350
    %1032 = vmatmul.f32.gmra.mxu0 %v995
    %v1033 = vpop.f32.mrf.mxu0
    %v1034 = vadd.f32 %v224, %v1033
    %1035 = vdwg.mxu0
    %v1036 = vxor.u32 %v1014, 2147483648
    %v1037 = vxor.u32 %v1034, 2147483648
    %v1038 = vmul.f32 %v1036, 1.442695
    %v1039 = vpow.pop %v1038
    %v1040 = vmul.f32 %v1037, 1.442695
    %v1041 = vpow.pop %v1040
    %v1042 = vadd.f32 %v1039, 1.0
    %v1043 = vadd.f32 %v1041, 1.0
    %v1044 = vrcp.pop %v1042
    %v1045 = vmul.f32 %v1042, %v1044
    %v1046 = vsub.f32 1.0, %v1045
    %v1047 = vmul.f32 %v1044, %v1046
    %v1048 = vadd.f32 %v1044, %v1047
    %vm1049 = vweird.f32 %v1042
    %vm1050 = vweird.f32 %v1044
    %vm1051 = vmor %vm1049, %vm1050
    %v1052 = vsel %vm1051, %v1044, %v1048
    %v1053 = vand.u32 2147483647, %v1042
    %vm1054 = vcmp.eq.f32.partialorder %v1053, 8.507059e+37
    %v1055 = vand.u32 %v1042, 2147483648
    %v1056 = vor.u32 1.1754944e-38, %v1055
    %v1057 = vsel %vm1054, %v1056, %v1052
    %v1058 = vmul.f32 1.0, %v1057
    %v1059 = vrcp.pop %v1043
    %v1060 = vmul.f32 %v1043, %v1059
    %v1061 = vsub.f32 1.0, %v1060
    %v1062 = vmul.f32 %v1059, %v1061
    %v1063 = vadd.f32 %v1059, %v1062
    %vm1064 = vweird.f32 %v1043
    %vm1065 = vweird.f32 %v1059
    %vm1066 = vmor %vm1064, %vm1065
    %v1067 = vsel %vm1066, %v1059, %v1063
    %v1068 = vand.u32 2147483647, %v1043
    %vm1069 = vcmp.eq.f32.partialorder %v1068, 8.507059e+37
    %v1070 = vand.u32 %v1043, 2147483648
    %v1071 = vor.u32 1.1754944e-38, %v1070
    %v1072 = vsel %vm1069, %v1071, %v1067
    %v1073 = vmul.f32 1.0, %v1072
    %v1074 = vtanh.pop %v1034
    %v1075 = vmul.f32 %v1058, %v880
    %1077 = vrot.lane.b32.xlu0 %v1074, 64
    %v1078 = vpop.permute.xlu0 %1077
    %v1080 = vmul.f32 %v1058, %v1078
    %1082 = vrot.lane.b32.xlu0 %v1080, 64
    %v1083 = vpop.permute.xlu0 %1082
    %v1085 = vadd.f32 %v1075, %v1083
    %v1086 = vtanh.pop %v1085
    %1088 = vrot.lane.b32.xlu0 %v1086, 64
    %v1089 = vpop.permute.xlu0 %1088
    %v1091 = vmul.f32 %v1073, %v1089
    %s1092 = smul.u32 4, 2
    %s1093 = smul.addr %s1092, 8
    %s1094 = scalar_lea.vmem [#allocation2], %s1093
    %v1095 = vld [vmem:[%s1094] sm:$0xff]
    %v1096 = vld [vmem:[%s1094 + $0x8] sm:$0xff]
    %v1098 = vsel %vm248, %v990, 0
    %1100 = vmatpush.msra.mxu0 0.0
    %1101 = vmatpush.msra.mxu0 0.0
    %1102 = vmatpush.msra.mxu0 0.0
    %1103 = vmatpush.msra.mxu0 0.0
    %1104 = vmatpush.msra.mxu0 0.0
    %1105 = vmatpush.msra.mxu0 0.0
    %1106 = vmatpush.msra.mxu0 0.0
    %1107 = vmatpush.msra.mxu0 0.0
    %1108 = vmatpush.msra.mxu0 %v241
    %1109 = vmatpush.msra.mxu0 %v239
    %1110 = vmatpush.msra.mxu0 %v237
    %1111 = vmatpush.msra.mxu0 %v235
    %1112 = vmatpush.msra.mxu0 %v233
    %1113 = vmatpush.msra.mxu0 %v231
    %1114 = vmatpush.msra.mxu0 %v229
    %1115 = vmatpush.msra.mxu0 %v227
    %1116 = vmatmul.f32.gmra.mxu0 %v1098
    %v1117 = vpop.f32.mrf.mxu0
    %v1118 = vadd.f32 %v1095, %v1117
    %1119 = vdwg.mxu0
    %1120 = vmatpush.msra.mxu0 0.0
    %1121 = vmatpush.msra.mxu0 0.0
    %1122 = vmatpush.msra.mxu0 0.0
    %1123 = vmatpush.msra.mxu0 0.0
    %1124 = vmatpush.msra.mxu0 0.0
    %1125 = vmatpush.msra.mxu0 0.0
    %1126 = vmatpush.msra.mxu0 0.0
    %1127 = vmatpush.msra.mxu0 0.0
    %1128 = vmatpush.msra.mxu0 %v242
    %1129 = vmatpush.msra.mxu0 %v240
    %1130 = vmatpush.msra.mxu0 %v238
    %1131 = vmatpush.msra.mxu0 %v236
    %1132 = vmatpush.msra.mxu0 %v234
    %1133 = vmatpush.msra.mxu0 %v232
    %1134 = vmatpush.msra.mxu0 %v230
    %1135 = vmatpush.msra.mxu0 %v228
    %1136 = vmatmul.f32.gmra.mxu0 %v1098
    %v1137 = vpop.f32.mrf.mxu0
    %v1138 = vadd.f32 %v1096, %v1137
    %1139 = vdwg.mxu0
    %v1140 = vxor.u32 %v1118, 2147483648
    %v1141 = vxor.u32 %v1138, 2147483648
    %v1142 = vmul.f32 %v1140, 1.442695
    %v1143 = vpow.pop %v1142
    %v1144 = vmul.f32 %v1141, 1.442695
    %v1145 = vpow.pop %v1144
    %v1146 = vadd.f32 %v1143, 1.0
    %v1147 = vadd.f32 %v1145, 1.0
    %v1148 = vrcp.pop %v1146
    %v1149 = vmul.f32 %v1146, %v1148
    %v1150 = vsub.f32 1.0, %v1149
    %v1151 = vmul.f32 %v1148, %v1150
    %v1152 = vadd.f32 %v1148, %v1151
    %vm1153 = vweird.f32 %v1146
    %vm1154 = vweird.f32 %v1148
    %vm1155 = vmor %vm1153, %vm1154
    %v1156 = vsel %vm1155, %v1148, %v1152
    %v1157 = vand.u32 2147483647, %v1146
    %vm1158 = vcmp.eq.f32.partialorder %v1157, 8.507059e+37
    %v1159 = vand.u32 %v1146, 2147483648
    %v1160 = vor.u32 1.1754944e-38, %v1159
    %v1161 = vsel %vm1158, %v1160, %v1156
    %v1162 = vmul.f32 1.0, %v1161
    %v1163 = vrcp.pop %v1147
    %v1164 = vmul.f32 %v1147, %v1163
    %v1165 = vsub.f32 1.0, %v1164
    %v1166 = vmul.f32 %v1163, %v1165
    %v1167 = vadd.f32 %v1163, %v1166
    %vm1168 = vweird.f32 %v1147
    %vm1169 = vweird.f32 %v1163
    %vm1170 = vmor %vm1168, %vm1169
    %v1171 = vsel %vm1170, %v1163, %v1167
    %v1172 = vand.u32 2147483647, %v1147
    %vm1173 = vcmp.eq.f32.partialorder %v1172, 8.507059e+37
    %v1174 = vand.u32 %v1147, 2147483648
    %v1175 = vor.u32 1.1754944e-38, %v1174
    %v1176 = vsel %vm1173, %v1175, %v1171
    %v1177 = vmul.f32 1.0, %v1176
    %v1178 = vtanh.pop %v1138
    %v1179 = vmul.f32 %v1162, %v984
    %1181 = vrot.lane.b32.xlu0 %v1178, 64
    %v1182 = vpop.permute.xlu0 %1181
    %v1184 = vmul.f32 %v1162, %v1182
    %1186 = vrot.lane.b32.xlu0 %v1184, 64
    %v1187 = vpop.permute.xlu0 %1186
    %v1189 = vadd.f32 %v1179, %v1187
    %v1190 = vtanh.pop %v1189
    %1192 = vrot.lane.b32.xlu0 %v1190, 64
    %v1193 = vpop.permute.xlu0 %1192
    %v1195 = vmul.f32 %v1177, %v1193
    %1197 = vrot.lane.b32.xlu0 %v1091, 64
    %v1198 = vpop.permute.xlu0 %1197
    %v1200 = vsel %vm248, %v1195, %v1198
    %1201 = vmatpush.msra.mxu0 %v379
    %1202 = vmatpush.msra.mxu0 %v377
    %1203 = vmatpush.msra.mxu0 %v375
    %1204 = vmatpush.msra.mxu0 %v373
    %1205 = vmatpush.msra.mxu0 %v371
    %1206 = vmatpush.msra.mxu0 %v369
    %1207 = vmatpush.msra.mxu0 %v367
    %1208 = vmatpush.msra.mxu0 %v365
    %1209 = vmatpush.msra.mxu0 %v363
    %1210 = vmatpush.msra.mxu0 %v361
    %1211 = vmatpush.msra.mxu0 %v359
    %1212 = vmatpush.msra.mxu0 %v357
    %1213 = vmatpush.msra.mxu0 %v355
    %1214 = vmatpush.msra.mxu0 %v353
    %1215 = vmatpush.msra.mxu0 %v351
    %1216 = vmatpush.msra.mxu0 %v349
    %1217 = vmatmul.f32.gmra.mxu0 %v1200
    %v1218 = vpop.f32.mrf.mxu0
    %v1219 = vadd.f32 %v223, %v1218
    %1220 = vdwg.mxu0
    %1221 = vmatpush.msra.mxu0 %v380
    %1222 = vmatpush.msra.mxu0 %v378
    %1223 = vmatpush.msra.mxu0 %v376
    %1224 = vmatpush.msra.mxu0 %v374
    %1225 = vmatpush.msra.mxu0 %v372
    %1226 = vmatpush.msra.mxu0 %v370
    %1227 = vmatpush.msra.mxu0 %v368
    %1228 = vmatpush.msra.mxu0 %v366
    %1229 = vmatpush.msra.mxu0 %v364
    %1230 = vmatpush.msra.mxu0 %v362
    %1231 = vmatpush.msra.mxu0 %v360
    %1232 = vmatpush.msra.mxu0 %v358
    %1233 = vmatpush.msra.mxu0 %v356
    %1234 = vmatpush.msra.mxu0 %v354
    %1235 = vmatpush.msra.mxu0 %v352
    %1236 = vmatpush.msra.mxu0 %v350
    %1237 = vmatmul.f32.gmra.mxu0 %v1200
    %v1238 = vpop.f32.mrf.mxu0
    %v1239 = vadd.f32 %v224, %v1238
    %1240 = vdwg.mxu0
    %v1241 = vxor.u32 %v1219, 2147483648
    %v1242 = vxor.u32 %v1239, 2147483648
    %v1243 = vmul.f32 %v1241, 1.442695
    %v1244 = vpow.pop %v1243
    %v1245 = vmul.f32 %v1242, 1.442695
    %v1246 = vpow.pop %v1245
    %v1247 = vadd.f32 %v1244, 1.0
    %v1248 = vadd.f32 %v1246, 1.0
    %v1249 = vrcp.pop %v1247
    %v1250 = vmul.f32 %v1247, %v1249
    %v1251 = vsub.f32 1.0, %v1250
    %v1252 = vmul.f32 %v1249, %v1251
    %v1253 = vadd.f32 %v1249, %v1252
    %vm1254 = vweird.f32 %v1247
    %vm1255 = vweird.f32 %v1249
    %vm1256 = vmor %vm1254, %vm1255
    %v1257 = vsel %vm1256, %v1249, %v1253
    %v1258 = vand.u32 2147483647, %v1247
    %vm1259 = vcmp.eq.f32.partialorder %v1258, 8.507059e+37
    %v1260 = vand.u32 %v1247, 2147483648
    %v1261 = vor.u32 1.1754944e-38, %v1260
    %v1262 = vsel %vm1259, %v1261, %v1257
    %v1263 = vmul.f32 1.0, %v1262
    %v1264 = vrcp.pop %v1248
    %v1265 = vmul.f32 %v1248, %v1264
    %v1266 = vsub.f32 1.0, %v1265
    %v1267 = vmul.f32 %v1264, %v1266
    %v1268 = vadd.f32 %v1264, %v1267
    %vm1269 = vweird.f32 %v1248
    %vm1270 = vweird.f32 %v1264
    %vm1271 = vmor %vm1269, %vm1270
    %v1272 = vsel %vm1271, %v1264, %v1268
    %v1273 = vand.u32 2147483647, %v1248
    %vm1274 = vcmp.eq.f32.partialorder %v1273, 8.507059e+37
    %v1275 = vand.u32 %v1248, 2147483648
    %v1276 = vor.u32 1.1754944e-38, %v1275
    %v1277 = vsel %vm1274, %v1276, %v1272
    %v1278 = vmul.f32 1.0, %v1277
    %v1279 = vtanh.pop %v1239
    %v1280 = vmul.f32 %v1263, %v1085
    %1282 = vrot.lane.b32.xlu0 %v1279, 64
    %v1283 = vpop.permute.xlu0 %1282
    %v1285 = vmul.f32 %v1263, %v1283
    %1287 = vrot.lane.b32.xlu0 %v1285, 64
    %v1288 = vpop.permute.xlu0 %1287
    %v1290 = vadd.f32 %v1280, %v1288
    %v1291 = vtanh.pop %v1290
    %1293 = vrot.lane.b32.xlu0 %v1291, 64
    %v1294 = vpop.permute.xlu0 %1293
    %v1296 = vmul.f32 %v1278, %v1294
    %s1297 = smul.u32 5, 2
    %s1298 = smul.addr %s1297, 8
    %s1299 = scalar_lea.vmem [#allocation2], %s1298
    %v1300 = vld [vmem:[%s1299] sm:$0xff]
    %v1301 = vld [vmem:[%s1299 + $0x8] sm:$0xff]
    %v1303 = vsel %vm248, %v1195, 0
    %1305 = vmatpush.msra.mxu0 0.0
    %1306 = vmatpush.msra.mxu0 0.0
    %1307 = vmatpush.msra.mxu0 0.0
    %1308 = vmatpush.msra.mxu0 0.0
    %1309 = vmatpush.msra.mxu0 0.0
    %1310 = vmatpush.msra.mxu0 0.0
    %1311 = vmatpush.msra.mxu0 0.0
    %1312 = vmatpush.msra.mxu0 0.0
    %1313 = vmatpush.msra.mxu0 %v241
    %1314 = vmatpush.msra.mxu0 %v239
    %1315 = vmatpush.msra.mxu0 %v237
    %1316 = vmatpush.msra.mxu0 %v235
    %1317 = vmatpush.msra.mxu0 %v233
    %1318 = vmatpush.msra.mxu0 %v231
    %1319 = vmatpush.msra.mxu0 %v229
    %1320 = vmatpush.msra.mxu0 %v227
    %1321 = vmatmul.f32.gmra.mxu0 %v1303
    %v1322 = vpop.f32.mrf.mxu0
    %v1323 = vadd.f32 %v1300, %v1322
    %1324 = vdwg.mxu0
    %1325 = vmatpush.msra.mxu0 0.0
    %1326 = vmatpush.msra.mxu0 0.0
    %1327 = vmatpush.msra.mxu0 0.0
    %1328 = vmatpush.msra.mxu0 0.0
    %1329 = vmatpush.msra.mxu0 0.0
    %1330 = vmatpush.msra.mxu0 0.0
    %1331 = vmatpush.msra.mxu0 0.0
    %1332 = vmatpush.msra.mxu0 0.0
    %1333 = vmatpush.msra.mxu0 %v242
    %1334 = vmatpush.msra.mxu0 %v240
    %1335 = vmatpush.msra.mxu0 %v238
    %1336 = vmatpush.msra.mxu0 %v236
    %1337 = vmatpush.msra.mxu0 %v234
    %1338 = vmatpush.msra.mxu0 %v232
    %1339 = vmatpush.msra.mxu0 %v230
    %1340 = vmatpush.msra.mxu0 %v228
    %1341 = vmatmul.f32.gmra.mxu0 %v1303
    %v1342 = vpop.f32.mrf.mxu0
    %v1343 = vadd.f32 %v1301, %v1342
    %1344 = vdwg.mxu0
    %v1345 = vxor.u32 %v1323, 2147483648
    %v1346 = vxor.u32 %v1343, 2147483648
    %v1347 = vmul.f32 %v1345, 1.442695
    %v1348 = vpow.pop %v1347
    %v1349 = vmul.f32 %v1346, 1.442695
    %v1350 = vpow.pop %v1349
    %v1351 = vadd.f32 %v1348, 1.0
    %v1352 = vadd.f32 %v1350, 1.0
    %v1353 = vrcp.pop %v1351
    %v1354 = vmul.f32 %v1351, %v1353
    %v1355 = vsub.f32 1.0, %v1354
    %v1356 = vmul.f32 %v1353, %v1355
    %v1357 = vadd.f32 %v1353, %v1356
    %vm1358 = vweird.f32 %v1351
    %vm1359 = vweird.f32 %v1353
    %vm1360 = vmor %vm1358, %vm1359
    %v1361 = vsel %vm1360, %v1353, %v1357
    %v1362 = vand.u32 2147483647, %v1351
    %vm1363 = vcmp.eq.f32.partialorder %v1362, 8.507059e+37
    %v1364 = vand.u32 %v1351, 2147483648
    %v1365 = vor.u32 1.1754944e-38, %v1364
    %v1366 = vsel %vm1363, %v1365, %v1361
    %v1367 = vmul.f32 1.0, %v1366
    %v1368 = vrcp.pop %v1352
    %v1369 = vmul.f32 %v1352, %v1368
    %v1370 = vsub.f32 1.0, %v1369
    %v1371 = vmul.f32 %v1368, %v1370
    %v1372 = vadd.f32 %v1368, %v1371
    %vm1373 = vweird.f32 %v1352
    %vm1374 = vweird.f32 %v1368
    %vm1375 = vmor %vm1373, %vm1374
    %v1376 = vsel %vm1375, %v1368, %v1372
    %v1377 = vand.u32 2147483647, %v1352
    %vm1378 = vcmp.eq.f32.partialorder %v1377, 8.507059e+37
    %v1379 = vand.u32 %v1352, 2147483648
    %v1380 = vor.u32 1.1754944e-38, %v1379
    %v1381 = vsel %vm1378, %v1380, %v1376
    %v1382 = vmul.f32 1.0, %v1381
    %v1383 = vtanh.pop %v1343
    %v1384 = vmul.f32 %v1367, %v1189
    %1386 = vrot.lane.b32.xlu0 %v1383, 64
    %v1387 = vpop.permute.xlu0 %1386
    %v1389 = vmul.f32 %v1367, %v1387
    %1391 = vrot.lane.b32.xlu0 %v1389, 64
    %v1392 = vpop.permute.xlu0 %1391
    %v1394 = vadd.f32 %v1384, %v1392
    %v1395 = vtanh.pop %v1394
    %1397 = vrot.lane.b32.xlu0 %v1395, 64
    %v1398 = vpop.permute.xlu0 %1397
    %v1400 = vmul.f32 %v1382, %v1398
    %1402 = vrot.lane.b32.xlu0 %v1296, 64
    %v1403 = vpop.permute.xlu0 %1402
    %v1405 = vsel %vm248, %v1400, %v1403
    %1406 = vmatpush.msra.mxu0 %v379
    %1407 = vmatpush.msra.mxu0 %v377
    %1408 = vmatpush.msra.mxu0 %v375
    %1409 = vmatpush.msra.mxu0 %v373
    %1410 = vmatpush.msra.mxu0 %v371
    %1411 = vmatpush.msra.mxu0 %v369
    %1412 = vmatpush.msra.mxu0 %v367
    %1413 = vmatpush.msra.mxu0 %v365
    %1414 = vmatpush.msra.mxu0 %v363
    %1415 = vmatpush.msra.mxu0 %v361
    %1416 = vmatpush.msra.mxu0 %v359
    %1417 = vmatpush.msra.mxu0 %v357
    %1418 = vmatpush.msra.mxu0 %v355
    %1419 = vmatpush.msra.mxu0 %v353
    %1420 = vmatpush.msra.mxu0 %v351
    %1421 = vmatpush.msra.mxu0 %v349
    %1422 = vmatmul.f32.gmra.mxu0 %v1405
    %v1423 = vpop.f32.mrf.mxu0
    %v1424 = vadd.f32 %v223, %v1423
    %1425 = vdwg.mxu0
    %1426 = vmatpush.msra.mxu0 %v380
    %1427 = vmatpush.msra.mxu0 %v378
    %1428 = vmatpush.msra.mxu0 %v376
    %1429 = vmatpush.msra.mxu0 %v374
    %1430 = vmatpush.msra.mxu0 %v372
    %1431 = vmatpush.msra.mxu0 %v370
    %1432 = vmatpush.msra.mxu0 %v368
    %1433 = vmatpush.msra.mxu0 %v366
    %1434 = vmatpush.msra.mxu0 %v364
    %1435 = vmatpush.msra.mxu0 %v362
    %1436 = vmatpush.msra.mxu0 %v360
    %1437 = vmatpush.msra.mxu0 %v358
    %1438 = vmatpush.msra.mxu0 %v356
    %1439 = vmatpush.msra.mxu0 %v354
    %1440 = vmatpush.msra.mxu0 %v352
    %1441 = vmatpush.msra.mxu0 %v350
    %1442 = vmatmul.f32.gmra.mxu0 %v1405
    %v1443 = vpop.f32.mrf.mxu0
    %v1444 = vadd.f32 %v224, %v1443
    %1445 = vdwg.mxu0
    %v1446 = vxor.u32 %v1424, 2147483648
    %v1447 = vxor.u32 %v1444, 2147483648
    %v1448 = vmul.f32 %v1446, 1.442695
    %v1449 = vpow.pop %v1448
    %v1450 = vmul.f32 %v1447, 1.442695
    %v1451 = vpow.pop %v1450
    %v1452 = vadd.f32 %v1449, 1.0
    %v1453 = vadd.f32 %v1451, 1.0
    %v1454 = vrcp.pop %v1452
    %v1455 = vmul.f32 %v1452, %v1454
    %v1456 = vsub.f32 1.0, %v1455
    %v1457 = vmul.f32 %v1454, %v1456
    %v1458 = vadd.f32 %v1454, %v1457
    %vm1459 = vweird.f32 %v1452
    %vm1460 = vweird.f32 %v1454
    %vm1461 = vmor %vm1459, %vm1460
    %v1462 = vsel %vm1461, %v1454, %v1458
    %v1463 = vand.u32 2147483647, %v1452
    %vm1464 = vcmp.eq.f32.partialorder %v1463, 8.507059e+37
    %v1465 = vand.u32 %v1452, 2147483648
    %v1466 = vor.u32 1.1754944e-38, %v1465
    %v1467 = vsel %vm1464, %v1466, %v1462
    %v1468 = vmul.f32 1.0, %v1467
    %v1469 = vrcp.pop %v1453
    %v1470 = vmul.f32 %v1453, %v1469
    %v1471 = vsub.f32 1.0, %v1470
    %v1472 = vmul.f32 %v1469, %v1471
    %v1473 = vadd.f32 %v1469, %v1472
    %vm1474 = vweird.f32 %v1453
    %vm1475 = vweird.f32 %v1469
    %vm1476 = vmor %vm1474, %vm1475
    %v1477 = vsel %vm1476, %v1469, %v1473
    %v1478 = vand.u32 2147483647, %v1453
    %vm1479 = vcmp.eq.f32.partialorder %v1478, 8.507059e+37
    %v1480 = vand.u32 %v1453, 2147483648
    %v1481 = vor.u32 1.1754944e-38, %v1480
    %v1482 = vsel %vm1479, %v1481, %v1477
    %v1483 = vmul.f32 1.0, %v1482
    %v1484 = vtanh.pop %v1444
    %v1485 = vmul.f32 %v1468, %v1290
    %1487 = vrot.lane.b32.xlu0 %v1484, 64
    %v1488 = vpop.permute.xlu0 %1487
    %v1490 = vmul.f32 %v1468, %v1488
    %1492 = vrot.lane.b32.xlu0 %v1490, 64
    %v1493 = vpop.permute.xlu0 %1492
    %v1495 = vadd.f32 %v1485, %v1493
    %v1496 = vtanh.pop %v1495
    %1498 = vrot.lane.b32.xlu0 %v1496, 64
    %v1499 = vpop.permute.xlu0 %1498
    %v1501 = vmul.f32 %v1483, %v1499
    %s1502 = smul.u32 6, 2
    %s1503 = smul.addr %s1502, 8
    %s1504 = scalar_lea.vmem [#allocation2], %s1503
    %v1505 = vld [vmem:[%s1504] sm:$0xff]
    %v1506 = vld [vmem:[%s1504 + $0x8] sm:$0xff]
    %v1508 = vsel %vm248, %v1400, 0
    %1510 = vmatpush.msra.mxu0 0.0
    %1511 = vmatpush.msra.mxu0 0.0
    %1512 = vmatpush.msra.mxu0 0.0
    %1513 = vmatpush.msra.mxu0 0.0
    %1514 = vmatpush.msra.mxu0 0.0
    %1515 = vmatpush.msra.mxu0 0.0
    %1516 = vmatpush.msra.mxu0 0.0
    %1517 = vmatpush.msra.mxu0 0.0
    %1518 = vmatpush.msra.mxu0 %v241
    %1519 = vmatpush.msra.mxu0 %v239
    %1520 = vmatpush.msra.mxu0 %v237
    %1521 = vmatpush.msra.mxu0 %v235
    %1522 = vmatpush.msra.mxu0 %v233
    %1523 = vmatpush.msra.mxu0 %v231
    %1524 = vmatpush.msra.mxu0 %v229
    %1525 = vmatpush.msra.mxu0 %v227
    %1526 = vmatmul.f32.gmra.mxu0 %v1508
    %v1527 = vpop.f32.mrf.mxu0
    %v1528 = vadd.f32 %v1505, %v1527
    %1529 = vdwg.mxu0
    %1530 = vmatpush.msra.mxu0 0.0
    %1531 = vmatpush.msra.mxu0 0.0
    %1532 = vmatpush.msra.mxu0 0.0
    %1533 = vmatpush.msra.mxu0 0.0
    %1534 = vmatpush.msra.mxu0 0.0
    %1535 = vmatpush.msra.mxu0 0.0
    %1536 = vmatpush.msra.mxu0 0.0
    %1537 = vmatpush.msra.mxu0 0.0
    %1538 = vmatpush.msra.mxu0 %v242
    %1539 = vmatpush.msra.mxu0 %v240
    %1540 = vmatpush.msra.mxu0 %v238
    %1541 = vmatpush.msra.mxu0 %v236
    %1542 = vmatpush.msra.mxu0 %v234
    %1543 = vmatpush.msra.mxu0 %v232
    %1544 = vmatpush.msra.mxu0 %v230
    %1545 = vmatpush.msra.mxu0 %v228
    %1546 = vmatmul.f32.gmra.mxu0 %v1508
    %v1547 = vpop.f32.mrf.mxu0
    %v1548 = vadd.f32 %v1506, %v1547
    %1549 = vdwg.mxu0
    %v1550 = vxor.u32 %v1528, 2147483648
    %v1551 = vxor.u32 %v1548, 2147483648
    %v1552 = vmul.f32 %v1550, 1.442695
    %v1553 = vpow.pop %v1552
    %v1554 = vmul.f32 %v1551, 1.442695
    %v1555 = vpow.pop %v1554
    %v1556 = vadd.f32 %v1553, 1.0
    %v1557 = vadd.f32 %v1555, 1.0
    %v1558 = vrcp.pop %v1556
    %v1559 = vmul.f32 %v1556, %v1558
    %v1560 = vsub.f32 1.0, %v1559
    %v1561 = vmul.f32 %v1558, %v1560
    %v1562 = vadd.f32 %v1558, %v1561
    %vm1563 = vweird.f32 %v1556
    %vm1564 = vweird.f32 %v1558
    %vm1565 = vmor %vm1563, %vm1564
    %v1566 = vsel %vm1565, %v1558, %v1562
    %v1567 = vand.u32 2147483647, %v1556
    %vm1568 = vcmp.eq.f32.partialorder %v1567, 8.507059e+37
    %v1569 = vand.u32 %v1556, 2147483648
    %v1570 = vor.u32 1.1754944e-38, %v1569
    %v1571 = vsel %vm1568, %v1570, %v1566
    %v1572 = vmul.f32 1.0, %v1571
    %v1573 = vrcp.pop %v1557
    %v1574 = vmul.f32 %v1557, %v1573
    %v1575 = vsub.f32 1.0, %v1574
    %v1576 = vmul.f32 %v1573, %v1575
    %v1577 = vadd.f32 %v1573, %v1576
    %vm1578 = vweird.f32 %v1557
    %vm1579 = vweird.f32 %v1573
    %vm1580 = vmor %vm1578, %vm1579
    %v1581 = vsel %vm1580, %v1573, %v1577
    %v1582 = vand.u32 2147483647, %v1557
    %vm1583 = vcmp.eq.f32.partialorder %v1582, 8.507059e+37
    %v1584 = vand.u32 %v1557, 2147483648
    %v1585 = vor.u32 1.1754944e-38, %v1584
    %v1586 = vsel %vm1583, %v1585, %v1581
    %v1587 = vmul.f32 1.0, %v1586
    %v1588 = vtanh.pop %v1548
    %v1589 = vmul.f32 %v1572, %v1394
    %1591 = vrot.lane.b32.xlu0 %v1588, 64
    %v1592 = vpop.permute.xlu0 %1591
    %v1594 = vmul.f32 %v1572, %v1592
    %1596 = vrot.lane.b32.xlu0 %v1594, 64
    %v1597 = vpop.permute.xlu0 %1596
    %v1599 = vadd.f32 %v1589, %v1597
    %v1600 = vtanh.pop %v1599
    %1602 = vrot.lane.b32.xlu0 %v1600, 64
    %v1603 = vpop.permute.xlu0 %1602
    %v1605 = vmul.f32 %v1587, %v1603
    %1607 = vrot.lane.b32.xlu0 %v1501, 64
    %v1608 = vpop.permute.xlu0 %1607
    %v1610 = vsel %vm248, %v1605, %v1608
    %1611 = vmatpush.msra.mxu0 %v379
    %1612 = vmatpush.msra.mxu0 %v377
    %1613 = vmatpush.msra.mxu0 %v375
    %1614 = vmatpush.msra.mxu0 %v373
    %1615 = vmatpush.msra.mxu0 %v371
    %1616 = vmatpush.msra.mxu0 %v369
    %1617 = vmatpush.msra.mxu0 %v367
    %1618 = vmatpush.msra.mxu0 %v365
    %1619 = vmatpush.msra.mxu0 %v363
    %1620 = vmatpush.msra.mxu0 %v361
    %1621 = vmatpush.msra.mxu0 %v359
    %1622 = vmatpush.msra.mxu0 %v357
    %1623 = vmatpush.msra.mxu0 %v355
    %1624 = vmatpush.msra.mxu0 %v353
    %1625 = vmatpush.msra.mxu0 %v351
    %1626 = vmatpush.msra.mxu0 %v349
    %1627 = vmatmul.f32.gmra.mxu0 %v1610
    %v1628 = vpop.f32.mrf.mxu0
    %v1629 = vadd.f32 %v223, %v1628
    %1630 = vdwg.mxu0
    %1631 = vmatpush.msra.mxu0 %v380
    %1632 = vmatpush.msra.mxu0 %v378
    %1633 = vmatpush.msra.mxu0 %v376
    %1634 = vmatpush.msra.mxu0 %v374
    %1635 = vmatpush.msra.mxu0 %v372
    %1636 = vmatpush.msra.mxu0 %v370
    %1637 = vmatpush.msra.mxu0 %v368
    %1638 = vmatpush.msra.mxu0 %v366
    %1639 = vmatpush.msra.mxu0 %v364
    %1640 = vmatpush.msra.mxu0 %v362
    %1641 = vmatpush.msra.mxu0 %v360
    %1642 = vmatpush.msra.mxu0 %v358
    %1643 = vmatpush.msra.mxu0 %v356
    %1644 = vmatpush.msra.mxu0 %v354
    %1645 = vmatpush.msra.mxu0 %v352
    %1646 = vmatpush.msra.mxu0 %v350
    %1647 = vmatmul.f32.gmra.mxu0 %v1610
    %v1648 = vpop.f32.mrf.mxu0
    %v1649 = vadd.f32 %v224, %v1648
    %1650 = vdwg.mxu0
    %v1651 = vxor.u32 %v1629, 2147483648
    %v1652 = vxor.u32 %v1649, 2147483648
    %v1653 = vmul.f32 %v1651, 1.442695
    %v1654 = vpow.pop %v1653
    %v1655 = vmul.f32 %v1652, 1.442695
    %v1656 = vpow.pop %v1655
    %v1657 = vadd.f32 %v1654, 1.0
    %v1658 = vadd.f32 %v1656, 1.0
    %v1659 = vrcp.pop %v1657
    %v1660 = vmul.f32 %v1657, %v1659
    %v1661 = vsub.f32 1.0, %v1660
    %v1662 = vmul.f32 %v1659, %v1661
    %v1663 = vadd.f32 %v1659, %v1662
    %vm1664 = vweird.f32 %v1657
    %vm1665 = vweird.f32 %v1659
    %vm1666 = vmor %vm1664, %vm1665
    %v1667 = vsel %vm1666, %v1659, %v1663
    %v1668 = vand.u32 2147483647, %v1657
    %vm1669 = vcmp.eq.f32.partialorder %v1668, 8.507059e+37
    %v1670 = vand.u32 %v1657, 2147483648
    %v1671 = vor.u32 1.1754944e-38, %v1670
    %v1672 = vsel %vm1669, %v1671, %v1667
    %v1673 = vmul.f32 1.0, %v1672
    %v1674 = vrcp.pop %v1658
    %v1675 = vmul.f32 %v1658, %v1674
    %v1676 = vsub.f32 1.0, %v1675
    %v1677 = vmul.f32 %v1674, %v1676
    %v1678 = vadd.f32 %v1674, %v1677
    %vm1679 = vweird.f32 %v1658
    %vm1680 = vweird.f32 %v1674
    %vm1681 = vmor %vm1679, %vm1680
    %v1682 = vsel %vm1681, %v1674, %v1678
    %v1683 = vand.u32 2147483647, %v1658
    %vm1684 = vcmp.eq.f32.partialorder %v1683, 8.507059e+37
    %v1685 = vand.u32 %v1658, 2147483648
    %v1686 = vor.u32 1.1754944e-38, %v1685
    %v1687 = vsel %vm1684, %v1686, %v1682
    %v1688 = vmul.f32 1.0, %v1687
    %v1689 = vtanh.pop %v1649
    %v1690 = vmul.f32 %v1673, %v1495
    %1692 = vrot.lane.b32.xlu0 %v1689, 64
    %v1693 = vpop.permute.xlu0 %1692
    %v1695 = vmul.f32 %v1673, %v1693
    %1697 = vrot.lane.b32.xlu0 %v1695, 64
    %v1698 = vpop.permute.xlu0 %1697
    %v1700 = vadd.f32 %v1690, %v1698
    %v1701 = vtanh.pop %v1700
    %1703 = vrot.lane.b32.xlu0 %v1701, 64
    %v1704 = vpop.permute.xlu0 %1703
    %v1706 = vmul.f32 %v1688, %v1704
    %s1707 = smul.u32 7, 2
    %s1708 = smul.addr %s1707, 8
    %s1709 = scalar_lea.vmem [#allocation2], %s1708
    %v1710 = vld [vmem:[%s1709] sm:$0xff]
    %v1711 = vld [vmem:[%s1709 + $0x8] sm:$0xff]
    %v1713 = vsel %vm248, %v1605, 0
    %1715 = vmatpush.msra.mxu0 0.0
    %1716 = vmatpush.msra.mxu0 0.0
    %1717 = vmatpush.msra.mxu0 0.0
    %1718 = vmatpush.msra.mxu0 0.0
    %1719 = vmatpush.msra.mxu0 0.0
    %1720 = vmatpush.msra.mxu0 0.0
    %1721 = vmatpush.msra.mxu0 0.0
    %1722 = vmatpush.msra.mxu0 0.0
    %1723 = vmatpush.msra.mxu0 %v241
    %1724 = vmatpush.msra.mxu0 %v239
    %1725 = vmatpush.msra.mxu0 %v237
    %1726 = vmatpush.msra.mxu0 %v235
    %1727 = vmatpush.msra.mxu0 %v233
    %1728 = vmatpush.msra.mxu0 %v231
    %1729 = vmatpush.msra.mxu0 %v229
    %1730 = vmatpush.msra.mxu0 %v227
    %1731 = vmatmul.f32.gmra.mxu0 %v1713
    %v1732 = vpop.f32.mrf.mxu0
    %v1733 = vadd.f32 %v1710, %v1732
    %1734 = vdwg.mxu0
    %1735 = vmatpush.msra.mxu0 0.0
    %1736 = vmatpush.msra.mxu0 0.0
    %1737 = vmatpush.msra.mxu0 0.0
    %1738 = vmatpush.msra.mxu0 0.0
    %1739 = vmatpush.msra.mxu0 0.0
    %1740 = vmatpush.msra.mxu0 0.0
    %1741 = vmatpush.msra.mxu0 0.0
    %1742 = vmatpush.msra.mxu0 0.0
    %1743 = vmatpush.msra.mxu0 %v242
    %1744 = vmatpush.msra.mxu0 %v240
    %1745 = vmatpush.msra.mxu0 %v238
    %1746 = vmatpush.msra.mxu0 %v236
    %1747 = vmatpush.msra.mxu0 %v234
    %1748 = vmatpush.msra.mxu0 %v232
    %1749 = vmatpush.msra.mxu0 %v230
    %1750 = vmatpush.msra.mxu0 %v228
    %1751 = vmatmul.f32.gmra.mxu0 %v1713
    %v1752 = vpop.f32.mrf.mxu0
    %v1753 = vadd.f32 %v1711, %v1752
    %1754 = vdwg.mxu0
    %v1755 = vxor.u32 %v1733, 2147483648
    %v1756 = vxor.u32 %v1753, 2147483648
    %v1757 = vmul.f32 %v1755, 1.442695
    %v1758 = vpow.pop %v1757
    %v1759 = vmul.f32 %v1756, 1.442695
    %v1760 = vpow.pop %v1759
    %v1761 = vadd.f32 %v1758, 1.0
    %v1762 = vadd.f32 %v1760, 1.0
    %v1763 = vrcp.pop %v1761
    %v1764 = vmul.f32 %v1761, %v1763
    %v1765 = vsub.f32 1.0, %v1764
    %v1766 = vmul.f32 %v1763, %v1765
    %v1767 = vadd.f32 %v1763, %v1766
    %vm1768 = vweird.f32 %v1761
    %vm1769 = vweird.f32 %v1763
    %vm1770 = vmor %vm1768, %vm1769
    %v1771 = vsel %vm1770, %v1763, %v1767
    %v1772 = vand.u32 2147483647, %v1761
    %vm1773 = vcmp.eq.f32.partialorder %v1772, 8.507059e+37
    %v1774 = vand.u32 %v1761, 2147483648
    %v1775 = vor.u32 1.1754944e-38, %v1774
    %v1776 = vsel %vm1773, %v1775, %v1771
    %v1777 = vmul.f32 1.0, %v1776
    %v1778 = vrcp.pop %v1762
    %v1779 = vmul.f32 %v1762, %v1778
    %v1780 = vsub.f32 1.0, %v1779
    %v1781 = vmul.f32 %v1778, %v1780
    %v1782 = vadd.f32 %v1778, %v1781
    %vm1783 = vweird.f32 %v1762
    %vm1784 = vweird.f32 %v1778
    %vm1785 = vmor %vm1783, %vm1784
    %v1786 = vsel %vm1785, %v1778, %v1782
    %v1787 = vand.u32 2147483647, %v1762
    %vm1788 = vcmp.eq.f32.partialorder %v1787, 8.507059e+37
    %v1789 = vand.u32 %v1762, 2147483648
    %v1790 = vor.u32 1.1754944e-38, %v1789
    %v1791 = vsel %vm1788, %v1790, %v1786
    %v1792 = vmul.f32 1.0, %v1791
    %v1793 = vtanh.pop %v1753
    %v1794 = vmul.f32 %v1777, %v1599
    %1796 = vrot.lane.b32.xlu0 %v1793, 64
    %v1797 = vpop.permute.xlu0 %1796
    %v1799 = vmul.f32 %v1777, %v1797
    %1801 = vrot.lane.b32.xlu0 %v1799, 64
    %v1802 = vpop.permute.xlu0 %1801
    %v1804 = vadd.f32 %v1794, %v1802
    %v1805 = vtanh.pop %v1804
    %1807 = vrot.lane.b32.xlu0 %v1805, 64
    %v1808 = vpop.permute.xlu0 %1807
    %v1810 = vmul.f32 %v1792, %v1808
    %1812 = vrot.lane.b32.xlu0 %v1706, 64
    %v1813 = vpop.permute.xlu0 %1812
    %v1815 = vsel %vm248, %v1810, %v1813
    %1816 = vmatpush.msra.mxu0 %v379
    %1817 = vmatpush.msra.mxu0 %v377
    %1818 = vmatpush.msra.mxu0 %v375
    %1819 = vmatpush.msra.mxu0 %v373
    %1820 = vmatpush.msra.mxu0 %v371
    %1821 = vmatpush.msra.mxu0 %v369
    %1822 = vmatpush.msra.mxu0 %v367
    %1823 = vmatpush.msra.mxu0 %v365
    %1824 = vmatpush.msra.mxu0 %v363
    %1825 = vmatpush.msra.mxu0 %v361
    %1826 = vmatpush.msra.mxu0 %v359
    %1827 = vmatpush.msra.mxu0 %v357
    %1828 = vmatpush.msra.mxu0 %v355
    %1829 = vmatpush.msra.mxu0 %v353
    %1830 = vmatpush.msra.mxu0 %v351
    %1831 = vmatpush.msra.mxu0 %v349
    %1832 = vmatmul.f32.gmra.mxu0 %v1815
    %v1833 = vpop.f32.mrf.mxu0
    %v1834 = vadd.f32 %v223, %v1833
    %1835 = vdwg.mxu0
    %1836 = vmatpush.msra.mxu0 %v380
    %1837 = vmatpush.msra.mxu0 %v378
    %1838 = vmatpush.msra.mxu0 %v376
    %1839 = vmatpush.msra.mxu0 %v374
    %1840 = vmatpush.msra.mxu0 %v372
    %1841 = vmatpush.msra.mxu0 %v370
    %1842 = vmatpush.msra.mxu0 %v368
    %1843 = vmatpush.msra.mxu0 %v366
    %1844 = vmatpush.msra.mxu0 %v364
    %1845 = vmatpush.msra.mxu0 %v362
    %1846 = vmatpush.msra.mxu0 %v360
    %1847 = vmatpush.msra.mxu0 %v358
    %1848 = vmatpush.msra.mxu0 %v356
    %1849 = vmatpush.msra.mxu0 %v354
    %1850 = vmatpush.msra.mxu0 %v352
    %1851 = vmatpush.msra.mxu0 %v350
    %1852 = vmatmul.f32.gmra.mxu0 %v1815
    %v1853 = vpop.f32.mrf.mxu0
    %v1854 = vadd.f32 %v224, %v1853
    %1855 = vdwg.mxu0
    %v1856 = vxor.u32 %v1834, 2147483648
    %v1857 = vxor.u32 %v1854, 2147483648
    %v1858 = vmul.f32 %v1856, 1.442695
    %v1859 = vpow.pop %v1858
    %v1860 = vmul.f32 %v1857, 1.442695
    %v1861 = vpow.pop %v1860
    %v1862 = vadd.f32 %v1859, 1.0
    %v1863 = vadd.f32 %v1861, 1.0
    %v1864 = vrcp.pop %v1862
    %v1865 = vmul.f32 %v1862, %v1864
    %v1866 = vsub.f32 1.0, %v1865
    %v1867 = vmul.f32 %v1864, %v1866
    %v1868 = vadd.f32 %v1864, %v1867
    %vm1869 = vweird.f32 %v1862
    %vm1870 = vweird.f32 %v1864
    %vm1871 = vmor %vm1869, %vm1870
    %v1872 = vsel %vm1871, %v1864, %v1868
    %v1873 = vand.u32 2147483647, %v1862
    %vm1874 = vcmp.eq.f32.partialorder %v1873, 8.507059e+37
    %v1875 = vand.u32 %v1862, 2147483648
    %v1876 = vor.u32 1.1754944e-38, %v1875
    %v1877 = vsel %vm1874, %v1876, %v1872
    %v1878 = vmul.f32 1.0, %v1877
    %v1879 = vrcp.pop %v1863
    %v1880 = vmul.f32 %v1863, %v1879
    %v1881 = vsub.f32 1.0, %v1880
    %v1882 = vmul.f32 %v1879, %v1881
    %v1883 = vadd.f32 %v1879, %v1882
    %vm1884 = vweird.f32 %v1863
    %vm1885 = vweird.f32 %v1879
    %vm1886 = vmor %vm1884, %vm1885
    %v1887 = vsel %vm1886, %v1879, %v1883
    %v1888 = vand.u32 2147483647, %v1863
    %vm1889 = vcmp.eq.f32.partialorder %v1888, 8.507059e+37
    %v1890 = vand.u32 %v1863, 2147483648
    %v1891 = vor.u32 1.1754944e-38, %v1890
    %v1892 = vsel %vm1889, %v1891, %v1887
    %v1893 = vmul.f32 1.0, %v1892
    %v1894 = vtanh.pop %v1854
    %v1895 = vmul.f32 %v1878, %v1700
    %1897 = vrot.lane.b32.xlu0 %v1894, 64
    %v1898 = vpop.permute.xlu0 %1897
    %v1900 = vmul.f32 %v1878, %v1898
    %1902 = vrot.lane.b32.xlu0 %v1900, 64
    %v1903 = vpop.permute.xlu0 %1902
    %v1905 = vadd.f32 %v1895, %v1903
    %v1906 = vtanh.pop %v1905
    %1908 = vrot.lane.b32.xlu0 %v1906, 64
    %v1909 = vpop.permute.xlu0 %1908
    %v1911 = vmul.f32 %v1893, %v1909
    %v1912 = vld [vmem:[%s6] sm:$0xff]
    %v1913 = vld [vmem:[%s6 + $0x8] sm:$0xff]
    %v1914 = vld [vmem:[%s6 + $0x10] sm:$0xff]
    %v1915 = vld [vmem:[%s6 + $0x18] sm:$0xff]
    %v1916 = vld [vmem:[%s6 + $0x20] sm:$0xff]
    %v1917 = vld [vmem:[%s6 + $0x28] sm:$0xff]
    %v1918 = vld [vmem:[%s6 + $0x30] sm:$0xff]
    %v1919 = vld [vmem:[%s6 + $0x38] sm:$0xff]
    %v1920 = vld [vmem:[%s7] sm:$0x1]
    %v1922 = vperm.slane %v1920, 0
    %v1925 = vsel %vm248, %v1911, 0
    %1927 = vmatpush.msra.mxu0 0.0
    %1928 = vmatpush.msra.mxu0 0.0
    %1929 = vmatpush.msra.mxu0 0.0
    %1930 = vmatpush.msra.mxu0 0.0
    %1931 = vmatpush.msra.mxu0 0.0
    %1932 = vmatpush.msra.mxu0 0.0
    %1933 = vmatpush.msra.mxu0 0.0
    %1934 = vmatpush.msra.mxu0 0.0
    %1935 = vmatpush.msra.mxu0 %v1919
    %1936 = vmatpush.msra.mxu0 %v1918
    %1937 = vmatpush.msra.mxu0 %v1917
    %1938 = vmatpush.msra.mxu0 %v1916
    %1939 = vmatpush.msra.mxu0 %v1915
    %1940 = vmatpush.msra.mxu0 %v1914
    %1941 = vmatpush.msra.mxu0 %v1913
    %1942 = vmatpush.msra.mxu0 %v1912
    %1943 = vmatmul.f32.gmra.mxu0 %v1925
    %v1944 = vpop.f32.mrf.mxu0
    %v1945 = vadd.f32 %v1922, %v1944
    %1946 = vdwg.mxu0
    %v1947 = vmax.f32 %v1945, 0.0
    %v1948 = vld [vmem:[%s8] sm:$0xff]
    %v1949 = vld [vmem:[%s8 + $0x8] sm:$0xff]
    %v1950 = vld [vmem:[%s8 + $0x10] sm:$0xff]
    %v1951 = vld [vmem:[%s8 + $0x18] sm:$0xff]
    %v1952 = vld [vmem:[#allocation3] sm:$0x1]
    %v1954 = vperm.slane %v1952, 0
    %vm1956 = vcmask 261120
    %v1958 = vsel %vm1956, %v1947, 0
    %1960 = vmatpush.msra.mxu0 0.0
    %1961 = vmatpush.msra.mxu0 0.0
    %1962 = vmatpush.msra.mxu0 0.0
    %1963 = vmatpush.msra.mxu0 0.0
    %1964 = vmatpush.msra.mxu0 0.0
    %1965 = vmatpush.msra.mxu0 0.0
    %1966 = vmatpush.msra.mxu0 0.0
    %1967 = vmatpush.msra.mxu0 0.0
    %1968 = vmatpush.msra.mxu0 0.0
    %1969 = vmatpush.msra.mxu0 0.0
    %1970 = vmatpush.msra.mxu0 0.0
    %1971 = vmatpush.msra.mxu0 0.0
    %1972 = vmatpush.msra.mxu0 %v1951
    %1973 = vmatpush.msra.mxu0 %v1950
    %1974 = vmatpush.msra.mxu0 %v1949
    %1975 = vmatpush.msra.mxu0 %v1948
    %1976 = vmatmul.f32.gmra.mxu0 %v1958
    %v1977 = vpop.f32.mrf.mxu0
    %v1978 = vadd.f32 %v1954, %v1977
    %1979 = vdwg.mxu0
    %v1980 = vmax.f32 %v1978, 1.0
    %v1981 = vmin.f32 %v1980, 3.0
    %vm1982 = vcmask 7168
    %1983 = vst.msk [vmem:[%s10] sm:$0xff] %vm1982, %v1981
    // Predicated region
    $region50: #{tpu_custom_call.1} parent=1 // pred_check
      _
    $region51: #{tpu_custom_call.1} parent=1 // pred_check_branch
      %1985 = sbr.rel (0) target = $region53
    $region52: #{tpu_custom_call.1} parent=1 // pred_region
      _
    $region53: #{tpu_custom_call.1} parent=1 // pred_fallthru
      _
    // Predicated region
    $region54: #{tpu_custom_call.1} parent=1 // pred_check
      _
    $region55: #{tpu_custom_call.1} parent=1 // pred_check_branch
      %1987 = sbr.rel (0) target = $region57
    $region56: #{tpu_custom_call.1} parent=1 // pred_region
      _
    $region57: #{tpu_custom_call.1} parent=1 // pred_fallthru
      _
    %1988 = vsyncpa [#allocation5], 1
    %1989 = vsyncpa [#allocation7], 1

</llo_original>
